<compile_context>
chip_gen: v5e
topology: v5e:2x2
jax: 0.10.0
libtpu: 0.0.40
codegen_flags: <defaults>
</compile_context>

<pallas_src>
import functools

import jax
import jax.numpy as jnp
from jax.experimental import pallas as pl
from jax.experimental.pallas import tpu as pltpu


LANE = 128
SUBLANE = 8


def _rup(x, m):
    return ((x + m - 1) // m) * m


# ----------------------------------------------------------------------------
# Fused Pallas kernel: the entire forward pass in one invocation.
# ----------------------------------------------------------------------------
def _fused_forward_kernel(
    v_ref, a_ref,
    w_emb1_ref, b_emb1_ref,
    w1_ref, b1_ref,
    w2_ref, b2_ref,
    w3_ref, b3_ref,
    we2_ref, be2_ref,
    w4_ref, b4_ref,
    w5_ref, b5_ref,
    wl_ref, bl_ref,
    logits_ref, emb_ref,
):
    num_rel = a_ref.shape[0]
    net_p = b1_ref.shape[1]
    half_p = b4_ref.shape[1]
    bf16 = jnp.bfloat16

    def dot(x, w):
        return jnp.dot(x, w, preferred_element_type=jnp.float32)

    def gcn(parts, b_ref, feat_p):
        """relu( sum_r A[r] @ (sum_i x_i @ W_i[r]) + b ).

        Relation-fused feature matmul: each W_i is [d_in_p, R*feat_p], so the
        inner loop issues ONE matmul per part; the per-relation 128-wide
        column blocks of the result are tile-aligned slices.
        `parts` with two entries implements concat-then-matmul via
        split-weight accumulation (no concatenation materialized).
        """
        h_all = None
        for x, w in parts:
            p = dot(x, w)
            h_all = p if h_all is None else h_all + p
        acc = None
        for r in range(num_rel):
            h_r = h_all[:, r * feat_p:(r + 1) * feat_p].astype(bf16)
            # Load A[r] from VMEM per use (don't hoist: keeps vreg pressure low).
            c = dot(a_ref[r], h_r)
            acc = c if acc is None else acc + c
        return jnp.maximum(acc + b_ref[...], 0.0)

    # emb1 (dropout1 = identity)
    x = dot(v_ref[...], w_emb1_ref[...]) + b_emb1_ref[...]
    xb = x.astype(bf16)

    # gcn1, gcn2 (dropout2/3 = identity)
    g1 = gcn([(xb, w1_ref[...])], b1_ref, net_p)
    g1b = g1.astype(bf16)
    g2 = gcn([(g1b, w2_ref[...])], b2_ref, net_p)
    g2b = g2.astype(bf16)

    # gcn3 on cat([g2, g1]) (dropout4 = identity); static tile-aligned ref slices.
    g3 = gcn([(g2b, w3_ref[:net_p, :]), (g1b, w3_ref[net_p:, :])], b3_ref, net_p)
    g3b = g3.astype(bf16)

    # emb2 on cat([g3, g1]) (dropout5 = identity)
    e2 = dot(g3b, we2_ref[:net_p, :]) + dot(g1b, we2_ref[net_p:, :]) + be2_ref[...]
    e2b = e2.astype(bf16)

    # gcn4, gcn5 (dropout6 = identity)
    g4 = gcn([(e2b, w4_ref[...])], b4_ref, half_p)
    g5 = gcn([(g4.astype(bf16), w5_ref[...])], b5_ref, half_p)

    emb_ref[...] = g5
    logits_ref[...] = dot(g5.astype(bf16), wl_ref[...]) + bl_ref[...]


# ----------------------------------------------------------------------------
# Parameters
# ----------------------------------------------------------------------------
def init_params(key, input_dim, output_dim, num_edges, net_size):
    half = net_size // 2

    def lin(k, d_in, d_out):
        kw, kb = jax.random.split(k)
        scale = 1.0 / jnp.sqrt(d_in)
        return (jax.random.uniform(kw, (d_in, d_out), jnp.float32, -scale, scale),
                jax.random.uniform(kb, (d_out,), jnp.float32, -scale, scale))

    def gcn(k, d_in, d_out):
        kw, kb = jax.random.split(k)
        scale = 1.0 / jnp.sqrt(d_in)
        return (jax.random.uniform(kw, (num_edges, d_in, d_out), jnp.float32, -scale, scale),
                jax.random.uniform(kb, (d_out,), jnp.float32, -scale, scale))

    keys = jax.random.split(key, 9)
    return {
        "emb1": lin(keys[0], input_dim, net_size),
        "gcn1": gcn(keys[1], net_size, net_size),
        "gcn2": gcn(keys[2], net_size, net_size),
        "gcn3": gcn(keys[3], net_size * 2, net_size),
        "emb2": lin(keys[4], net_size * 2, half),
        "gcn4": gcn(keys[5], half, half),
        "gcn5": gcn(keys[6], half, half),
        "last": lin(keys[7], half, output_dim),
    }


# ----------------------------------------------------------------------------
# Wrapper: pad to lane-dense shapes, fuse relation weights, call the kernel.
# ----------------------------------------------------------------------------
def _fuse_rel(w, d_in_p, d_out_p):
    """[R, d_in, d_out] -> bf16 [d_in_p, R*d_out_p] (relation-fused, zero-padded)."""
    r, d_in, d_out = w.shape
    w_p = jnp.pad(w, ((0, 0), (0, d_in_p - d_in), (0, d_out_p - d_out)))
    return jnp.transpose(w_p, (1, 0, 2)).reshape(d_in_p, r * d_out_p).astype(jnp.bfloat16)


def _pad2(w, d_in_p, d_out_p):
    d_in, d_out = w.shape
    return jnp.pad(w, ((0, d_in_p - d_in), (0, d_out_p - d_out))).astype(jnp.bfloat16)


def _pad_bias(b, d_p):
    return jnp.pad(b, (0, d_p - b.shape[0])).reshape(1, d_p).astype(jnp.float32)


def _flops_estimate(n_p, d_p, net_p, half_p, out_p, r):
    f = 2 * n_p * d_p * net_p                                           # emb1
    f += 2 * (2 * n_p * net_p * (r * net_p) + r * 2 * n_p * n_p * net_p)  # gcn1, gcn2
    f += 2 * (2 * n_p * net_p * (r * net_p)) + r * 2 * n_p * n_p * net_p  # gcn3 (two parts)
    f += 2 * (2 * n_p * net_p * half_p)                                 # emb2 (two parts)
    f += 2 * (2 * n_p * half_p * (r * half_p) + r * 2 * n_p * n_p * half_p)  # gcn4, gcn5
    f += 2 * n_p * half_p * out_p                                       # last
    return int(f)


@functools.partial(jax.jit, static_argnames=("get_last_embedding",))
def funsd_forward(V, A, params, get_last_embedding=False):
    n, input_dim = V.shape
    num_edges = A.shape[0]
    net = params["emb1"][0].shape[1]
    half = net // 2
    out_dim = params["last"][0].shape[1]

    n_p = _rup(n, SUBLANE)
    d_p = _rup(input_dim, LANE)
    net_p = _rup(net, LANE)
    half_p = _rup(half, LANE)
    out_p = _rup(out_dim, LANE)

    w_emb1, b_emb1 = params["emb1"]
    w1, b1 = params["gcn1"]
    w2, b2 = params["gcn2"]
    w3, b3 = params["gcn3"]
    we2, be2 = params["emb2"]
    w4, b4 = params["gcn4"]
    w5, b5 = params["gcn5"]
    wl, bl = params["last"]

    # Lane-dense, bf16, relation-fused weights.  For the two concatenations the
    # split halves are stacked row-wise so the kernel takes zero-cost static
    # slices: rows [0:net_p] consume g2/g3, rows [net_p:] consume g1.
    w3_cat = jnp.concatenate([_fuse_rel(w3[:, :net, :], net_p, net_p),
                              _fuse_rel(w3[:, net:, :], net_p, net_p)], axis=0)
    we2_cat = jnp.concatenate([_pad2(we2[:net, :], net_p, half_p),
                               _pad2(we2[net:, :], net_p, half_p)], axis=0)

    V_p = jnp.pad(V, ((0, n_p - n), (0, d_p - input_dim))).astype(jnp.bfloat16)
    A_p = jnp.pad(A, ((0, 0), (0, n_p - n), (0, n_p - n))).astype(jnp.bfloat16)

    inputs = (
        V_p, A_p,
        _pad2(w_emb1, d_p, net_p), _pad_bias(b_emb1, net_p),
        _fuse_rel(w1, net_p, net_p), _pad_bias(b1, net_p),
        _fuse_rel(w2, net_p, net_p), _pad_bias(b2, net_p),
        w3_cat, _pad_bias(b3, net_p),
        we2_cat, _pad_bias(be2, half_p),
        _fuse_rel(w4, half_p, half_p), _pad_bias(b4, half_p),
        _fuse_rel(w5, half_p, half_p), _pad_bias(b5, half_p),
        _pad2(wl, half_p, out_p), _pad_bias(bl, out_p),
    )

    bytes_accessed = sum(int(x.size) * x.dtype.itemsize for x in inputs)
    bytes_accessed += 4 * (n_p * out_p + n_p * half_p)
    cost = pl.CostEstimate(
        flops=_flops_estimate(n_p, d_p, net_p, half_p, out_p, num_edges),
        transcendentals=0,
        bytes_accessed=int(bytes_accessed),
    )

    vmem = pl.BlockSpec(memory_space=pltpu.MemorySpace.VMEM)
    logits_p, emb_p = pl.pallas_call(
        _fused_forward_kernel,
        out_shape=(
            jax.ShapeDtypeStruct((n_p, out_p), jnp.float32),
            jax.ShapeDtypeStruct((n_p, half_p), jnp.float32),
        ),
        in_specs=[vmem] * len(inputs),
        out_specs=(vmem, vmem),
        compiler_params=pltpu.CompilerParams(vmem_limit_bytes=64 * 1024 * 1024),
        cost_estimate=cost,
    )(*inputs)

    logits = logits_p[:n, :out_dim]
    emb = emb_p[:n, :half]
    if get_last_embedding:
        return logits, emb
    return logits


# ----------------------------------------------------------------------------
# Pure-JAX reference (explicit concatenations, same bf16/f32 mixed precision).
# ----------------------------------------------------------------------------
def _reference_forward(V, A, params):
    bf = jnp.bfloat16
    Ab = A.astype(bf)

    def lin(x, wb):
        w, b = wb
        return jnp.dot(x.astype(bf), w.astype(bf),
                       preferred_element_type=jnp.float32) + b

    def gcn(x, wb):
        w, b = wb
        xb = x.astype(bf)
        acc = None
        for r in range(w.shape[0]):
            h = jnp.dot(xb, w[r].astype(bf), preferred_element_type=jnp.float32)
            c = jnp.dot(Ab[r], h.astype(bf), preferred_element_type=jnp.float32)
            acc = c if acc is None else acc + c
        return jnp.maximum(acc + b, 0.0)

    x = lin(V, params["emb1"])
    g1 = gcn(x, params["gcn1"])
    g2 = gcn(g1, params["gcn2"])
    g3 = gcn(jnp.concatenate([g2, g1], axis=-1), params["gcn3"])
    e2 = lin(jnp.concatenate([g3, g1], axis=-1), params["emb2"])
    g5 = gcn(gcn(e2, params["gcn4"]), params["gcn5"])
    return lin(g5, params["last"]), g5


# ----------------------------------------------------------------------------
if __name__ == "__main__":
    N = 8            # number of graph nodes
    INPUT_DIM = 16
    OUTPUT_DIM = 4
    NUM_EDGES = 2    # number of edge types (relations)
    NET_SIZE = 32

    key = jax.random.PRNGKey(0)
    k_v, k_a, k_p = jax.random.split(key, 3)

    V = jax.random.normal(k_v, (N, INPUT_DIM), dtype=jnp.float32)
    # Row-normalized multi-relational adjacency [R, N, N].
    A_raw = jax.random.uniform(k_a, (NUM_EDGES, N, N), dtype=jnp.float32)
    A = A_raw / jnp.sum(A_raw, axis=-1, keepdims=True)

    params = init_params(k_p, INPUT_DIM, OUTPUT_DIM, NUM_EDGES, NET_SIZE)

    logits = funsd_forward(V, A, params)
    logits = jax.block_until_ready(logits)
    assert logits.shape == (N, OUTPUT_DIM), logits.shape

    logits2, emb = funsd_forward(V, A, params, get_last_embedding=True)
    jax.block_until_ready((logits2, emb))
    assert emb.shape == (N, NET_SIZE // 2), emb.shape

    # Validate the fused lane-padded / split-weight kernel against the
    # explicit-concat reference using the same bf16/f32 mixed precision.
    ref_logits, ref_emb = _reference_forward(V, A, params)
    assert float(jnp.max(jnp.abs(logits2 - ref_logits))) < 5e-3
    assert float(jnp.max(jnp.abs(emb - ref_emb))) < 5e-3

    print("KERNEL_OK")
</pallas_src>

<mosaic_0001>
module attributes {stable_mosaic.version = 11 : i64} {
  func.func @_fused_forward_kernel(%arg0: memref<8x128xbf16, #tpu.memory_space<vmem>>, %arg1: memref<2x8x8xbf16, #tpu.memory_space<vmem>>, %arg2: memref<128x128xbf16, #tpu.memory_space<vmem>>, %arg3: memref<1x128xf32, #tpu.memory_space<vmem>>, %arg4: memref<128x256xbf16, #tpu.memory_space<vmem>>, %arg5: memref<1x128xf32, #tpu.memory_space<vmem>>, %arg6: memref<128x256xbf16, #tpu.memory_space<vmem>>, %arg7: memref<1x128xf32, #tpu.memory_space<vmem>>, %arg8: memref<256x256xbf16, #tpu.memory_space<vmem>>, %arg9: memref<1x128xf32, #tpu.memory_space<vmem>>, %arg10: memref<256x128xbf16, #tpu.memory_space<vmem>>, %arg11: memref<1x128xf32, #tpu.memory_space<vmem>>, %arg12: memref<128x256xbf16, #tpu.memory_space<vmem>>, %arg13: memref<1x128xf32, #tpu.memory_space<vmem>>, %arg14: memref<128x256xbf16, #tpu.memory_space<vmem>>, %arg15: memref<1x128xf32, #tpu.memory_space<vmem>>, %arg16: memref<128x128xbf16, #tpu.memory_space<vmem>>, %arg17: memref<1x128xf32, #tpu.memory_space<vmem>>, %arg18: memref<8x128xf32, #tpu.memory_space<vmem>>, %arg19: memref<8x128xf32, #tpu.memory_space<vmem>>) attributes {dimension_semantics = [], scalar_prefetch = 0 : i64, scratch_operands = 0 : i64, tpu.core_type = #tpu.core_type<tc>} {
    %c0 = arith.constant 0 : index
    %c0_0 = arith.constant 0 : index
    %0 = vector.load %arg0[%c0, %c0_0] : memref<8x128xbf16, #tpu.memory_space<vmem>>, vector<8x128xbf16>
    %c0_1 = arith.constant 0 : index
    %c0_2 = arith.constant 0 : index
    %1 = vector.load %arg2[%c0_1, %c0_2] : memref<128x128xbf16, #tpu.memory_space<vmem>>, vector<128x128xbf16>
    %cst = arith.constant dense<0.000000e+00> : vector<8x128xf32>
    %2 = tpu.matmul %0, %1, %cst {dimension_numbers = #tpu.dot_dimension_numbers<[1], [0], [0], [1], [0, 0, 1, 1], [], []>} : vector<8x128xbf16>, vector<128x128xbf16>, vector<8x128xf32> -> vector<8x128xf32>
    %c0_3 = arith.constant 0 : index
    %c0_4 = arith.constant 0 : index
    %3 = vector.load %arg3[%c0_3, %c0_4] : memref<1x128xf32, #tpu.memory_space<vmem>>, vector<1x128xf32>
    %4 = vector.broadcast %3 : vector<1x128xf32> to vector<8x128xf32>
    %5 = arith.addf %2, %4 : vector<8x128xf32>
    %6 = arith.truncf %5 : vector<8x128xf32> to vector<8x128xbf16>
    %c0_5 = arith.constant 0 : index
    %c0_6 = arith.constant 0 : index
    %7 = vector.load %arg4[%c0_5, %c0_6] : memref<128x256xbf16, #tpu.memory_space<vmem>>, vector<128x256xbf16>
    %cst_7 = arith.constant dense<0.000000e+00> : vector<8x256xf32>
    %8 = tpu.matmul %6, %7, %cst_7 {dimension_numbers = #tpu.dot_dimension_numbers<[1], [0], [0], [1], [0, 0, 1, 1], [], []>} : vector<8x128xbf16>, vector<128x256xbf16>, vector<8x256xf32> -> vector<8x256xf32>
    %9 = vector.extract_strided_slice %8 {offsets = [0, 0], sizes = [8, 128], strides = [1, 1]} : vector<8x256xf32> to vector<8x128xf32>
    %10 = arith.truncf %9 : vector<8x128xf32> to vector<8x128xbf16>
    %c0_8 = arith.constant 0 : index
    %c0_9 = arith.constant 0 : index
    %c0_10 = arith.constant 0 : index
    %11 = vector.load %arg1[%c0_8, %c0_9, %c0_10] : memref<2x8x8xbf16, #tpu.memory_space<vmem>>, vector<1x8x8xbf16>
    %12 = vector.shape_cast %11 : vector<1x8x8xbf16> to vector<8x8xbf16>
    %cst_11 = arith.constant dense<0.000000e+00> : vector<8x128xf32>
    %13 = tpu.matmul %12, %10, %cst_11 {dimension_numbers = #tpu.dot_dimension_numbers<[1], [0], [0], [1], [0, 0, 1, 1], [], []>} : vector<8x8xbf16>, vector<8x128xbf16>, vector<8x128xf32> -> vector<8x128xf32>
    %14 = vector.extract_strided_slice %8 {offsets = [0, 128], sizes = [8, 128], strides = [1, 1]} : vector<8x256xf32> to vector<8x128xf32>
    %15 = arith.truncf %14 : vector<8x128xf32> to vector<8x128xbf16>
    %c1 = arith.constant 1 : index
    %c0_12 = arith.constant 0 : index
    %c0_13 = arith.constant 0 : index
    %16 = vector.load %arg1[%c1, %c0_12, %c0_13] : memref<2x8x8xbf16, #tpu.memory_space<vmem>>, vector<1x8x8xbf16>
    %17 = vector.shape_cast %16 : vector<1x8x8xbf16> to vector<8x8xbf16>
    %cst_14 = arith.constant dense<0.000000e+00> : vector<8x128xf32>
    %18 = tpu.matmul %17, %15, %cst_14 {dimension_numbers = #tpu.dot_dimension_numbers<[1], [0], [0], [1], [0, 0, 1, 1], [], []>} : vector<8x8xbf16>, vector<8x128xbf16>, vector<8x128xf32> -> vector<8x128xf32>
    %19 = arith.addf %13, %18 : vector<8x128xf32>
    %c0_15 = arith.constant 0 : index
    %c0_16 = arith.constant 0 : index
    %20 = vector.load %arg5[%c0_15, %c0_16] : memref<1x128xf32, #tpu.memory_space<vmem>>, vector<1x128xf32>
    %21 = vector.broadcast %20 : vector<1x128xf32> to vector<8x128xf32>
    %22 = arith.addf %19, %21 : vector<8x128xf32>
    %cst_17 = arith.constant 0.000000e+00 : f32
    %23 = vector.broadcast %cst_17 : f32 to vector<8x128xf32>
    %24 = arith.maximumf %22, %23 : vector<8x128xf32>
    %25 = arith.truncf %24 : vector<8x128xf32> to vector<8x128xbf16>
    %c0_18 = arith.constant 0 : index
    %c0_19 = arith.constant 0 : index
    %26 = vector.load %arg6[%c0_18, %c0_19] : memref<128x256xbf16, #tpu.memory_space<vmem>>, vector<128x256xbf16>
    %cst_20 = arith.constant dense<0.000000e+00> : vector<8x256xf32>
    %27 = tpu.matmul %25, %26, %cst_20 {dimension_numbers = #tpu.dot_dimension_numbers<[1], [0], [0], [1], [0, 0, 1, 1], [], []>} : vector<8x128xbf16>, vector<128x256xbf16>, vector<8x256xf32> -> vector<8x256xf32>
    %28 = vector.extract_strided_slice %27 {offsets = [0, 0], sizes = [8, 128], strides = [1, 1]} : vector<8x256xf32> to vector<8x128xf32>
    %29 = arith.truncf %28 : vector<8x128xf32> to vector<8x128xbf16>
    %c0_21 = arith.constant 0 : index
    %c0_22 = arith.constant 0 : index
    %c0_23 = arith.constant 0 : index
    %30 = vector.load %arg1[%c0_21, %c0_22, %c0_23] : memref<2x8x8xbf16, #tpu.memory_space<vmem>>, vector<1x8x8xbf16>
    %31 = vector.shape_cast %30 : vector<1x8x8xbf16> to vector<8x8xbf16>
    %cst_24 = arith.constant dense<0.000000e+00> : vector<8x128xf32>
    %32 = tpu.matmul %31, %29, %cst_24 {dimension_numbers = #tpu.dot_dimension_numbers<[1], [0], [0], [1], [0, 0, 1, 1], [], []>} : vector<8x8xbf16>, vector<8x128xbf16>, vector<8x128xf32> -> vector<8x128xf32>
    %33 = vector.extract_strided_slice %27 {offsets = [0, 128], sizes = [8, 128], strides = [1, 1]} : vector<8x256xf32> to vector<8x128xf32>
    %34 = arith.truncf %33 : vector<8x128xf32> to vector<8x128xbf16>
    %c1_25 = arith.constant 1 : index
    %c0_26 = arith.constant 0 : index
    %c0_27 = arith.constant 0 : index
    %35 = vector.load %arg1[%c1_25, %c0_26, %c0_27] : memref<2x8x8xbf16, #tpu.memory_space<vmem>>, vector<1x8x8xbf16>
    %36 = vector.shape_cast %35 : vector<1x8x8xbf16> to vector<8x8xbf16>
    %cst_28 = arith.constant dense<0.000000e+00> : vector<8x128xf32>
    %37 = tpu.matmul %36, %34, %cst_28 {dimension_numbers = #tpu.dot_dimension_numbers<[1], [0], [0], [1], [0, 0, 1, 1], [], []>} : vector<8x8xbf16>, vector<8x128xbf16>, vector<8x128xf32> -> vector<8x128xf32>
    %38 = arith.addf %32, %37 : vector<8x128xf32>
    %c0_29 = arith.constant 0 : index
    %c0_30 = arith.constant 0 : index
    %39 = vector.load %arg7[%c0_29, %c0_30] : memref<1x128xf32, #tpu.memory_space<vmem>>, vector<1x128xf32>
    %40 = vector.broadcast %39 : vector<1x128xf32> to vector<8x128xf32>
    %41 = arith.addf %38, %40 : vector<8x128xf32>
    %cst_31 = arith.constant 0.000000e+00 : f32
    %42 = vector.broadcast %cst_31 : f32 to vector<8x128xf32>
    %43 = arith.maximumf %41, %42 : vector<8x128xf32>
    %44 = arith.truncf %43 : vector<8x128xf32> to vector<8x128xbf16>
    %c0_32 = arith.constant 0 : index
    %c0_33 = arith.constant 0 : index
    %45 = vector.load %arg8[%c0_32, %c0_33] : memref<256x256xbf16, #tpu.memory_space<vmem>>, vector<128x256xbf16>
    %c128 = arith.constant 128 : index
    %c0_34 = arith.constant 0 : index
    %46 = vector.load %arg8[%c128, %c0_34] : memref<256x256xbf16, #tpu.memory_space<vmem>>, vector<128x256xbf16>
    %cst_35 = arith.constant dense<0.000000e+00> : vector<8x256xf32>
    %47 = tpu.matmul %44, %45, %cst_35 {dimension_numbers = #tpu.dot_dimension_numbers<[1], [0], [0], [1], [0, 0, 1, 1], [], []>} : vector<8x128xbf16>, vector<128x256xbf16>, vector<8x256xf32> -> vector<8x256xf32>
    %cst_36 = arith.constant dense<0.000000e+00> : vector<8x256xf32>
    %48 = tpu.matmul %25, %46, %cst_36 {dimension_numbers = #tpu.dot_dimension_numbers<[1], [0], [0], [1], [0, 0, 1, 1], [], []>} : vector<8x128xbf16>, vector<128x256xbf16>, vector<8x256xf32> -> vector<8x256xf32>
    %49 = arith.addf %47, %48 : vector<8x256xf32>
    %50 = vector.extract_strided_slice %49 {offsets = [0, 0], sizes = [8, 128], strides = [1, 1]} : vector<8x256xf32> to vector<8x128xf32>
    %51 = arith.truncf %50 : vector<8x128xf32> to vector<8x128xbf16>
    %c0_37 = arith.constant 0 : index
    %c0_38 = arith.constant 0 : index
    %c0_39 = arith.constant 0 : index
    %52 = vector.load %arg1[%c0_37, %c0_38, %c0_39] : memref<2x8x8xbf16, #tpu.memory_space<vmem>>, vector<1x8x8xbf16>
    %53 = vector.shape_cast %52 : vector<1x8x8xbf16> to vector<8x8xbf16>
    %cst_40 = arith.constant dense<0.000000e+00> : vector<8x128xf32>
    %54 = tpu.matmul %53, %51, %cst_40 {dimension_numbers = #tpu.dot_dimension_numbers<[1], [0], [0], [1], [0, 0, 1, 1], [], []>} : vector<8x8xbf16>, vector<8x128xbf16>, vector<8x128xf32> -> vector<8x128xf32>
    %55 = vector.extract_strided_slice %49 {offsets = [0, 128], sizes = [8, 128], strides = [1, 1]} : vector<8x256xf32> to vector<8x128xf32>
    %56 = arith.truncf %55 : vector<8x128xf32> to vector<8x128xbf16>
    %c1_41 = arith.constant 1 : index
    %c0_42 = arith.constant 0 : index
    %c0_43 = arith.constant 0 : index
    %57 = vector.load %arg1[%c1_41, %c0_42, %c0_43] : memref<2x8x8xbf16, #tpu.memory_space<vmem>>, vector<1x8x8xbf16>
    %58 = vector.shape_cast %57 : vector<1x8x8xbf16> to vector<8x8xbf16>
    %cst_44 = arith.constant dense<0.000000e+00> : vector<8x128xf32>
    %59 = tpu.matmul %58, %56, %cst_44 {dimension_numbers = #tpu.dot_dimension_numbers<[1], [0], [0], [1], [0, 0, 1, 1], [], []>} : vector<8x8xbf16>, vector<8x128xbf16>, vector<8x128xf32> -> vector<8x128xf32>
    %60 = arith.addf %54, %59 : vector<8x128xf32>
    %c0_45 = arith.constant 0 : index
    %c0_46 = arith.constant 0 : index
    %61 = vector.load %arg9[%c0_45, %c0_46] : memref<1x128xf32, #tpu.memory_space<vmem>>, vector<1x128xf32>
    %62 = vector.broadcast %61 : vector<1x128xf32> to vector<8x128xf32>
    %63 = arith.addf %60, %62 : vector<8x128xf32>
    %cst_47 = arith.constant 0.000000e+00 : f32
    %64 = vector.broadcast %cst_47 : f32 to vector<8x128xf32>
    %65 = arith.maximumf %63, %64 : vector<8x128xf32>
    %66 = arith.truncf %65 : vector<8x128xf32> to vector<8x128xbf16>
    %c0_48 = arith.constant 0 : index
    %c0_49 = arith.constant 0 : index
    %67 = vector.load %arg10[%c0_48, %c0_49] : memref<256x128xbf16, #tpu.memory_space<vmem>>, vector<128x128xbf16>
    %cst_50 = arith.constant dense<0.000000e+00> : vector<8x128xf32>
    %68 = tpu.matmul %66, %67, %cst_50 {dimension_numbers = #tpu.dot_dimension_numbers<[1], [0], [0], [1], [0, 0, 1, 1], [], []>} : vector<8x128xbf16>, vector<128x128xbf16>, vector<8x128xf32> -> vector<8x128xf32>
    %c128_51 = arith.constant 128 : index
    %c0_52 = arith.constant 0 : index
    %69 = vector.load %arg10[%c128_51, %c0_52] : memref<256x128xbf16, #tpu.memory_space<vmem>>, vector<128x128xbf16>
    %cst_53 = arith.constant dense<0.000000e+00> : vector<8x128xf32>
    %70 = tpu.matmul %25, %69, %cst_53 {dimension_numbers = #tpu.dot_dimension_numbers<[1], [0], [0], [1], [0, 0, 1, 1], [], []>} : vector<8x128xbf16>, vector<128x128xbf16>, vector<8x128xf32> -> vector<8x128xf32>
    %71 = arith.addf %68, %70 : vector<8x128xf32>
    %c0_54 = arith.constant 0 : index
    %c0_55 = arith.constant 0 : index
    %72 = vector.load %arg11[%c0_54, %c0_55] : memref<1x128xf32, #tpu.memory_space<vmem>>, vector<1x128xf32>
    %73 = vector.broadcast %72 : vector<1x128xf32> to vector<8x128xf32>
    %74 = arith.addf %71, %73 : vector<8x128xf32>
    %75 = arith.truncf %74 : vector<8x128xf32> to vector<8x128xbf16>
    %c0_56 = arith.constant 0 : index
    %c0_57 = arith.constant 0 : index
    %76 = vector.load %arg12[%c0_56, %c0_57] : memref<128x256xbf16, #tpu.memory_space<vmem>>, vector<128x256xbf16>
    %cst_58 = arith.constant dense<0.000000e+00> : vector<8x256xf32>
    %77 = tpu.matmul %75, %76, %cst_58 {dimension_numbers = #tpu.dot_dimension_numbers<[1], [0], [0], [1], [0, 0, 1, 1], [], []>} : vector<8x128xbf16>, vector<128x256xbf16>, vector<8x256xf32> -> vector<8x256xf32>
    %78 = vector.extract_strided_slice %77 {offsets = [0, 0], sizes = [8, 128], strides = [1, 1]} : vector<8x256xf32> to vector<8x128xf32>
    %79 = arith.truncf %78 : vector<8x128xf32> to vector<8x128xbf16>
    %c0_59 = arith.constant 0 : index
    %c0_60 = arith.constant 0 : index
    %c0_61 = arith.constant 0 : index
    %80 = vector.load %arg1[%c0_59, %c0_60, %c0_61] : memref<2x8x8xbf16, #tpu.memory_space<vmem>>, vector<1x8x8xbf16>
    %81 = vector.shape_cast %80 : vector<1x8x8xbf16> to vector<8x8xbf16>
    %cst_62 = arith.constant dense<0.000000e+00> : vector<8x128xf32>
    %82 = tpu.matmul %81, %79, %cst_62 {dimension_numbers = #tpu.dot_dimension_numbers<[1], [0], [0], [1], [0, 0, 1, 1], [], []>} : vector<8x8xbf16>, vector<8x128xbf16>, vector<8x128xf32> -> vector<8x128xf32>
    %83 = vector.extract_strided_slice %77 {offsets = [0, 128], sizes = [8, 128], strides = [1, 1]} : vector<8x256xf32> to vector<8x128xf32>
    %84 = arith.truncf %83 : vector<8x128xf32> to vector<8x128xbf16>
    %c1_63 = arith.constant 1 : index
    %c0_64 = arith.constant 0 : index
    %c0_65 = arith.constant 0 : index
    %85 = vector.load %arg1[%c1_63, %c0_64, %c0_65] : memref<2x8x8xbf16, #tpu.memory_space<vmem>>, vector<1x8x8xbf16>
    %86 = vector.shape_cast %85 : vector<1x8x8xbf16> to vector<8x8xbf16>
    %cst_66 = arith.constant dense<0.000000e+00> : vector<8x128xf32>
    %87 = tpu.matmul %86, %84, %cst_66 {dimension_numbers = #tpu.dot_dimension_numbers<[1], [0], [0], [1], [0, 0, 1, 1], [], []>} : vector<8x8xbf16>, vector<8x128xbf16>, vector<8x128xf32> -> vector<8x128xf32>
    %88 = arith.addf %82, %87 : vector<8x128xf32>
    %c0_67 = arith.constant 0 : index
    %c0_68 = arith.constant 0 : index
    %89 = vector.load %arg13[%c0_67, %c0_68] : memref<1x128xf32, #tpu.memory_space<vmem>>, vector<1x128xf32>
    %90 = vector.broadcast %89 : vector<1x128xf32> to vector<8x128xf32>
    %91 = arith.addf %88, %90 : vector<8x128xf32>
    %cst_69 = arith.constant 0.000000e+00 : f32
    %92 = vector.broadcast %cst_69 : f32 to vector<8x128xf32>
    %93 = arith.maximumf %91, %92 : vector<8x128xf32>
    %94 = arith.truncf %93 : vector<8x128xf32> to vector<8x128xbf16>
    %c0_70 = arith.constant 0 : index
    %c0_71 = arith.constant 0 : index
    %95 = vector.load %arg14[%c0_70, %c0_71] : memref<128x256xbf16, #tpu.memory_space<vmem>>, vector<128x256xbf16>
    %cst_72 = arith.constant dense<0.000000e+00> : vector<8x256xf32>
    %96 = tpu.matmul %94, %95, %cst_72 {dimension_numbers = #tpu.dot_dimension_numbers<[1], [0], [0], [1], [0, 0, 1, 1], [], []>} : vector<8x128xbf16>, vector<128x256xbf16>, vector<8x256xf32> -> vector<8x256xf32>
    %97 = vector.extract_strided_slice %96 {offsets = [0, 0], sizes = [8, 128], strides = [1, 1]} : vector<8x256xf32> to vector<8x128xf32>
    %98 = arith.truncf %97 : vector<8x128xf32> to vector<8x128xbf16>
    %c0_73 = arith.constant 0 : index
    %c0_74 = arith.constant 0 : index
    %c0_75 = arith.constant 0 : index
    %99 = vector.load %arg1[%c0_73, %c0_74, %c0_75] : memref<2x8x8xbf16, #tpu.memory_space<vmem>>, vector<1x8x8xbf16>
    %100 = vector.shape_cast %99 : vector<1x8x8xbf16> to vector<8x8xbf16>
    %cst_76 = arith.constant dense<0.000000e+00> : vector<8x128xf32>
    %101 = tpu.matmul %100, %98, %cst_76 {dimension_numbers = #tpu.dot_dimension_numbers<[1], [0], [0], [1], [0, 0, 1, 1], [], []>} : vector<8x8xbf16>, vector<8x128xbf16>, vector<8x128xf32> -> vector<8x128xf32>
    %102 = vector.extract_strided_slice %96 {offsets = [0, 128], sizes = [8, 128], strides = [1, 1]} : vector<8x256xf32> to vector<8x128xf32>
    %103 = arith.truncf %102 : vector<8x128xf32> to vector<8x128xbf16>
    %c1_77 = arith.constant 1 : index
    %c0_78 = arith.constant 0 : index
    %c0_79 = arith.constant 0 : index
    %104 = vector.load %arg1[%c1_77, %c0_78, %c0_79] : memref<2x8x8xbf16, #tpu.memory_space<vmem>>, vector<1x8x8xbf16>
    %105 = vector.shape_cast %104 : vector<1x8x8xbf16> to vector<8x8xbf16>
    %cst_80 = arith.constant dense<0.000000e+00> : vector<8x128xf32>
    %106 = tpu.matmul %105, %103, %cst_80 {dimension_numbers = #tpu.dot_dimension_numbers<[1], [0], [0], [1], [0, 0, 1, 1], [], []>} : vector<8x8xbf16>, vector<8x128xbf16>, vector<8x128xf32> -> vector<8x128xf32>
    %107 = arith.addf %101, %106 : vector<8x128xf32>
    %c0_81 = arith.constant 0 : index
    %c0_82 = arith.constant 0 : index
    %108 = vector.load %arg15[%c0_81, %c0_82] : memref<1x128xf32, #tpu.memory_space<vmem>>, vector<1x128xf32>
    %109 = vector.broadcast %108 : vector<1x128xf32> to vector<8x128xf32>
    %110 = arith.addf %107, %109 : vector<8x128xf32>
    %cst_83 = arith.constant 0.000000e+00 : f32
    %111 = vector.broadcast %cst_83 : f32 to vector<8x128xf32>
    %112 = arith.maximumf %110, %111 : vector<8x128xf32>
    %c0_84 = arith.constant 0 : index
    %c0_85 = arith.constant 0 : index
    %113 = vector.load %arg19[%c0_84, %c0_85] : memref<8x128xf32, #tpu.memory_space<vmem>>, vector<8x128xf32>
    tpu.vector_store %arg19[%c0_84, %c0_85], %112 {strides = array<i32>} : memref<8x128xf32, #tpu.memory_space<vmem>>, vector<8x128xf32>,
    %114 = arith.truncf %112 : vector<8x128xf32> to vector<8x128xbf16>
    %c0_86 = arith.constant 0 : index
    %c0_87 = arith.constant 0 : index
    %115 = vector.load %arg16[%c0_86, %c0_87] : memref<128x128xbf16, #tpu.memory_space<vmem>>, vector<128x128xbf16>
    %cst_88 = arith.constant dense<0.000000e+00> : vector<8x128xf32>
    %116 = tpu.matmul %114, %115, %cst_88 {dimension_numbers = #tpu.dot_dimension_numbers<[1], [0], [0], [1], [0, 0, 1, 1], [], []>} : vector<8x128xbf16>, vector<128x128xbf16>, vector<8x128xf32> -> vector<8x128xf32>
    %c0_89 = arith.constant 0 : index
    %c0_90 = arith.constant 0 : index
    %117 = vector.load %arg17[%c0_89, %c0_90] : memref<1x128xf32, #tpu.memory_space<vmem>>, vector<1x128xf32>
    %118 = vector.broadcast %117 : vector<1x128xf32> to vector<8x128xf32>
    %119 = arith.addf %116, %118 : vector<8x128xf32>
    %c0_91 = arith.constant 0 : index
    %c0_92 = arith.constant 0 : index
    %120 = vector.load %arg18[%c0_91, %c0_92] : memref<8x128xf32, #tpu.memory_space<vmem>>, vector<8x128xf32>
    tpu.vector_store %arg18[%c0_91, %c0_92], %119 {strides = array<i32>} : memref<8x128xf32, #tpu.memory_space<vmem>>, vector<8x128xf32>,
    return
  }
}

</mosaic_0001>

<llo_original>
// kernel: funsd_forward.1
$region0: #{funsd_forward.1}
  #allocation0 [shape = 'u32[]', space=smem, size = 0x4, offset = 0x4, fixed_abs, tag = 'smem constant byte address 0x4 - core index']
  #allocation1 [shape = 'u32[72,128]{1,0:T(1,128)}', space=vmem, size = 0x9000, scoped, tag = 'internal scratch']
  %s0 = inlined_call_operand.vmem [shape: bf16[8,128], index: 0, kind: input, shape index: {}]
  %s1 = inlined_call_operand.vmem [shape: bf16[2,8,8], index: 1, kind: input, shape index: {}]
  %s2 = inlined_call_operand.vmem [shape: bf16[128,128], index: 2, kind: input, shape index: {}]
  %s3 = inlined_call_operand.vmem [shape: f32[1,128], index: 3, kind: input, shape index: {}]
  %s4 = inlined_call_operand.vmem [shape: bf16[128,256], index: 4, kind: input, shape index: {}]
  %s5 = inlined_call_operand.vmem [shape: f32[1,128], index: 5, kind: input, shape index: {}]
  %s6 = inlined_call_operand.vmem [shape: bf16[128,256], index: 6, kind: input, shape index: {}]
  %s7 = inlined_call_operand.vmem [shape: f32[1,128], index: 7, kind: input, shape index: {}]
  %s8 = inlined_call_operand.vmem [shape: bf16[256,256], index: 8, kind: input, shape index: {}]
  %s9 = inlined_call_operand.vmem [shape: f32[1,128], index: 9, kind: input, shape index: {}]
  %s10 = inlined_call_operand.vmem [shape: bf16[256,128], index: 10, kind: input, shape index: {}]
  %s11 = inlined_call_operand.vmem [shape: f32[1,128], index: 11, kind: input, shape index: {}]
  %s12 = inlined_call_operand.vmem [shape: bf16[128,256], index: 12, kind: input, shape index: {}]
  %s13 = inlined_call_operand.vmem [shape: f32[1,128], index: 13, kind: input, shape index: {}]
  %s14 = inlined_call_operand.vmem [shape: bf16[128,256], index: 14, kind: input, shape index: {}]
  %s15 = inlined_call_operand.vmem [shape: f32[1,128], index: 15, kind: input, shape index: {}]
  %s16 = inlined_call_operand.vmem [shape: bf16[128,128], index: 16, kind: input, shape index: {}]
  %s17 = inlined_call_operand.vmem [shape: f32[1,128], index: 17, kind: input, shape index: {}]
  %s18 = inlined_call_operand.vmem [shape: f32[8,128], index: 18, kind: output, shape index: {0}]
  %s19 = inlined_call_operand.hbm [shape: f32[8,128], index: 19, kind: output, shape index: {1}]
  %20 = xla_tuple %s18, %s19
  %s21 = sld [smem:[#allocation0]]
  $region90: #{funsd_forward.1} parent=0
    _
  %s23 = ssub.s32 1, %s21
  %s24 = scalar_select 0, %s23, %s21
  $region1: #{funsd_forward.1} parent=0
    #allocation2 [shape = 'u8[4096]{0}', space=vmem, size = 0x1000, scoped, tag = 'output window, operand 1, single buffered']
    #allocation3 [shape = 's32[1]{0}', space=sflag, size = 0x4, scoped, tag = 'scoped memory for funsd_forward.1']
    %25 = vsyncpa [#allocation3], 0
    // Predicated region
    $region2: #{funsd_forward.1} parent=1 // pred_check
      _
    $region3: #{funsd_forward.1} parent=1 // pred_check_branch
      %27 = sbr.rel (0) target = $region5
    $region4: #{funsd_forward.1} parent=1 // pred_region
      _
    $region5: #{funsd_forward.1} parent=1 // pred_fallthru
      _
    // Predicated region
    $region6: #{funsd_forward.1} parent=1 // pred_check
      _
    $region7: #{funsd_forward.1} parent=1 // pred_check_branch
      %29 = sbr.rel (0) target = $region9
    $region8: #{funsd_forward.1} parent=1 // pred_region
      _
    $region9: #{funsd_forward.1} parent=1 // pred_fallthru
      _
    // Predicated region
    $region10: #{funsd_forward.1} parent=1 // pred_check
      _
    $region11: #{funsd_forward.1} parent=1 // pred_check_branch
      %31 = sbr.rel (0) target = $region13
    $region12: #{funsd_forward.1} parent=1 // pred_region
      _
    $region13: #{funsd_forward.1} parent=1 // pred_fallthru
      _
    // Predicated region
    $region14: #{funsd_forward.1} parent=1 // pred_check
      _
    $region15: #{funsd_forward.1} parent=1 // pred_check_branch
      %33 = sbr.rel (0) target = $region17
    $region16: #{funsd_forward.1} parent=1 // pred_region
      _
    $region17: #{funsd_forward.1} parent=1 // pred_fallthru
      _
    // Predicated region
    $region18: #{funsd_forward.1} parent=1 // pred_check
      _
    $region19: #{funsd_forward.1} parent=1 // pred_check_branch
      %35 = sbr.rel (0) target = $region21
    $region20: #{funsd_forward.1} parent=1 // pred_region
      _
    $region21: #{funsd_forward.1} parent=1 // pred_fallthru
      _
    // Predicated region
    $region22: #{funsd_forward.1} parent=1 // pred_check
      _
    $region23: #{funsd_forward.1} parent=1 // pred_check_branch
      %37 = sbr.rel (0) target = $region25
    $region24: #{funsd_forward.1} parent=1 // pred_region
      _
    $region25: #{funsd_forward.1} parent=1 // pred_fallthru
      _
    // Predicated region
    $region26: #{funsd_forward.1} parent=1 // pred_check
      _
    $region27: #{funsd_forward.1} parent=1 // pred_check_branch
      %39 = sbr.rel (0) target = $region29
    $region28: #{funsd_forward.1} parent=1 // pred_region
      _
    $region29: #{funsd_forward.1} parent=1 // pred_fallthru
      _
    // Predicated region
    $region30: #{funsd_forward.1} parent=1 // pred_check
      _
    $region31: #{funsd_forward.1} parent=1 // pred_check_branch
      %41 = sbr.rel (0) target = $region33
    $region32: #{funsd_forward.1} parent=1 // pred_region
      _
    $region33: #{funsd_forward.1} parent=1 // pred_fallthru
      _
    // Predicated region
    $region34: #{funsd_forward.1} parent=1 // pred_check
      _
    $region35: #{funsd_forward.1} parent=1 // pred_check_branch
      %43 = sbr.rel (0) target = $region37
    $region36: #{funsd_forward.1} parent=1 // pred_region
      _
    $region37: #{funsd_forward.1} parent=1 // pred_fallthru
      _
    // Predicated region
    $region38: #{funsd_forward.1} parent=1 // pred_check
      _
    $region39: #{funsd_forward.1} parent=1 // pred_check_branch
      %45 = sbr.rel (0) target = $region41
    $region40: #{funsd_forward.1} parent=1 // pred_region
      _
    $region41: #{funsd_forward.1} parent=1 // pred_fallthru
      _
    // Predicated region
    $region42: #{funsd_forward.1} parent=1 // pred_check
      _
    $region43: #{funsd_forward.1} parent=1 // pred_check_branch
      %47 = sbr.rel (0) target = $region45
    $region44: #{funsd_forward.1} parent=1 // pred_region
      _
    $region45: #{funsd_forward.1} parent=1 // pred_fallthru
      _
    // Predicated region
    $region46: #{funsd_forward.1} parent=1 // pred_check
      _
    $region47: #{funsd_forward.1} parent=1 // pred_check_branch
      %49 = sbr.rel (0) target = $region49
    $region48: #{funsd_forward.1} parent=1 // pred_region
      _
    $region49: #{funsd_forward.1} parent=1 // pred_fallthru
      _
    // Predicated region
    $region50: #{funsd_forward.1} parent=1 // pred_check
      _
    $region51: #{funsd_forward.1} parent=1 // pred_check_branch
      %51 = sbr.rel (0) target = $region53
    $region52: #{funsd_forward.1} parent=1 // pred_region
      _
    $region53: #{funsd_forward.1} parent=1 // pred_fallthru
      _
    // Predicated region
    $region54: #{funsd_forward.1} parent=1 // pred_check
      _
    $region55: #{funsd_forward.1} parent=1 // pred_check_branch
      %53 = sbr.rel (0) target = $region57
    $region56: #{funsd_forward.1} parent=1 // pred_region
      _
    $region57: #{funsd_forward.1} parent=1 // pred_fallthru
      _
    // Predicated region
    $region58: #{funsd_forward.1} parent=1 // pred_check
      _
    $region59: #{funsd_forward.1} parent=1 // pred_check_branch
      %55 = sbr.rel (0) target = $region61
    $region60: #{funsd_forward.1} parent=1 // pred_region
      _
    $region61: #{funsd_forward.1} parent=1 // pred_fallthru
      _
    // Predicated region
    $region62: #{funsd_forward.1} parent=1 // pred_check
      _
    $region63: #{funsd_forward.1} parent=1 // pred_check_branch
      %57 = sbr.rel (0) target = $region65
    $region64: #{funsd_forward.1} parent=1 // pred_region
      _
    $region65: #{funsd_forward.1} parent=1 // pred_fallthru
      _
    // Predicated region
    $region66: #{funsd_forward.1} parent=1 // pred_check
      _
    $region67: #{funsd_forward.1} parent=1 // pred_check_branch
      %59 = sbr.rel (0) target = $region69
    $region68: #{funsd_forward.1} parent=1 // pred_region
      _
    $region69: #{funsd_forward.1} parent=1 // pred_fallthru
      _
    // Predicated region
    $region70: #{funsd_forward.1} parent=1 // pred_check
      _
    $region71: #{funsd_forward.1} parent=1 // pred_check_branch
      %61 = sbr.rel (0) target = $region73
    $region72: #{funsd_forward.1} parent=1 // pred_region
      _
    $region73: #{funsd_forward.1} parent=1 // pred_fallthru
      _
    %v63 = vld [vmem:[%s0] sm:$0xf]
    %v64 = vld [vmem:[%s2] sm:$0xf]
    %v65 = vld [vmem:[%s2 + $0x4] sm:$0xf]
    %v66 = vld [vmem:[%s2 + $0x8] sm:$0xf]
    %v67 = vld [vmem:[%s2 + $0xc] sm:$0xf]
    %v68 = vld [vmem:[%s2 + $0x10] sm:$0xf]
    %v69 = vld [vmem:[%s2 + $0x14] sm:$0xf]
    %v70 = vld [vmem:[%s2 + $0x18] sm:$0xf]
    %v71 = vld [vmem:[%s2 + $0x1c] sm:$0xf]
    %v72 = vld [vmem:[%s2 + $0x20] sm:$0xf]
    %v73 = vld [vmem:[%s2 + $0x24] sm:$0xf]
    %v74 = vld [vmem:[%s2 + $0x28] sm:$0xf]
    %v75 = vld [vmem:[%s2 + $0x2c] sm:$0xf]
    %v76 = vld [vmem:[%s2 + $0x30] sm:$0xf]
    %v77 = vld [vmem:[%s2 + $0x34] sm:$0xf]
    %v78 = vld [vmem:[%s2 + $0x38] sm:$0xf]
    %v79 = vld [vmem:[%s2 + $0x3c] sm:$0xf]
    %v80 = vld [vmem:[%s3] sm:$0x1]
    %v82 = vperm.slane %v80, 0
    %v100 = vunpack.c.l.b16 %v64
    %v101 = vunpack.c.l.b16 %v65
    %v102 = vunpack.c.l.b16 %v66
    %v103 = vunpack.c.l.b16 %v67
    %v104 = vunpack.c.l.b16 %v68
    %v105 = vunpack.c.l.b16 %v69
    %v106 = vunpack.c.l.b16 %v70
    %v107 = vunpack.c.l.b16 %v71
    %v108 = vunpack.c.l.b16 %v72
    %v109 = vunpack.c.l.b16 %v73
    %v110 = vunpack.c.l.b16 %v74
    %v111 = vunpack.c.l.b16 %v75
    %v112 = vunpack.c.l.b16 %v76
    %v113 = vunpack.c.l.b16 %v77
    %v114 = vunpack.c.l.b16 %v78
    %v115 = vunpack.c.l.b16 %v79
    %v116 = vpack.c.b16 %v101, %v100
    %v117 = vpack.c.b16 %v103, %v102
    %v118 = vpack.c.b16 %v105, %v104
    %v119 = vpack.c.b16 %v107, %v106
    %v120 = vpack.c.b16 %v109, %v108
    %v121 = vpack.c.b16 %v111, %v110
    %v122 = vpack.c.b16 %v113, %v112
    %v123 = vpack.c.b16 %v115, %v114
    %132 = vmatpush.bf16.msra.mxu0 %v123
    %133 = vmatpush.bf16.msra.mxu0 %v122
    %134 = vmatpush.bf16.msra.mxu0 %v121
    %135 = vmatpush.bf16.msra.mxu0 %v120
    %136 = vmatpush.bf16.msra.mxu0 %v119
    %137 = vmatpush.bf16.msra.mxu0 %v118
    %138 = vmatpush.bf16.msra.mxu0 %v117
    %139 = vmatpush.bf16.msra.mxu0 %v116
    %140 = vmatmul.bf16.gmra.mxu0 %v63
    %v141 = vpop.f32.mrf.mxu0
    %v142 = vadd.f32 %v82, %v141
    %v143 = vpop.f32.mrf.mxu0
    %144 = vdwg.mxu0
    %v145 = vpack.c.bf16 %v142, %v142
    %v146 = vld [vmem:[%s4] sm:$0xff]
    %v147 = vld [vmem:[%s4 + $0x8] sm:$0xff]
    %v148 = vld [vmem:[%s4 + $0x10] sm:$0xff]
    %v149 = vld [vmem:[%s4 + $0x18] sm:$0xff]
    %v150 = vld [vmem:[%s4 + $0x20] sm:$0xff]
    %v151 = vld [vmem:[%s4 + $0x28] sm:$0xff]
    %v152 = vld [vmem:[%s4 + $0x30] sm:$0xff]
    %v153 = vld [vmem:[%s4 + $0x38] sm:$0xff]
    %v154 = vld [vmem:[%s4 + $0x40] sm:$0xff]
    %v155 = vld [vmem:[%s4 + $0x48] sm:$0xff]
    %v156 = vld [vmem:[%s4 + $0x50] sm:$0xff]
    %v157 = vld [vmem:[%s4 + $0x58] sm:$0xff]
    %v158 = vld [vmem:[%s4 + $0x60] sm:$0xff]
    %v159 = vld [vmem:[%s4 + $0x68] sm:$0xff]
    %v160 = vld [vmem:[%s4 + $0x70] sm:$0xff]
    %v161 = vld [vmem:[%s4 + $0x78] sm:$0xff]
    %v178 = vunpack.c.l.b16 %v146
    %v179 = vunpack.c.h.b16 %v146
    %v180 = vunpack.c.l.b16 %v147
    %v181 = vunpack.c.h.b16 %v147
    %v182 = vunpack.c.l.b16 %v148
    %v183 = vunpack.c.h.b16 %v148
    %v184 = vunpack.c.l.b16 %v149
    %v185 = vunpack.c.h.b16 %v149
    %v186 = vunpack.c.l.b16 %v150
    %v187 = vunpack.c.h.b16 %v150
    %v188 = vunpack.c.l.b16 %v151
    %v189 = vunpack.c.h.b16 %v151
    %v190 = vunpack.c.l.b16 %v152
    %v191 = vunpack.c.h.b16 %v152
    %v192 = vunpack.c.l.b16 %v153
    %v193 = vunpack.c.h.b16 %v153
    %v194 = vunpack.c.l.b16 %v154
    %v195 = vunpack.c.h.b16 %v154
    %v196 = vunpack.c.l.b16 %v155
    %v197 = vunpack.c.h.b16 %v155
    %v198 = vunpack.c.l.b16 %v156
    %v199 = vunpack.c.h.b16 %v156
    %v200 = vunpack.c.l.b16 %v157
    %v201 = vunpack.c.h.b16 %v157
    %v202 = vunpack.c.l.b16 %v158
    %v203 = vunpack.c.h.b16 %v158
    %v204 = vunpack.c.l.b16 %v159
    %v205 = vunpack.c.h.b16 %v159
    %v206 = vunpack.c.l.b16 %v160
    %v207 = vunpack.c.h.b16 %v160
    %v208 = vunpack.c.l.b16 %v161
    %v209 = vunpack.c.h.b16 %v161
    %v210 = vpack.c.b16 %v180, %v178
    %v211 = vpack.c.b16 %v181, %v179
    %v212 = vpack.c.b16 %v184, %v182
    %v213 = vpack.c.b16 %v185, %v183
    %v214 = vpack.c.b16 %v188, %v186
    %v215 = vpack.c.b16 %v189, %v187
    %v216 = vpack.c.b16 %v192, %v190
    %v217 = vpack.c.b16 %v193, %v191
    %v218 = vpack.c.b16 %v196, %v194
    %v219 = vpack.c.b16 %v197, %v195
    %v220 = vpack.c.b16 %v200, %v198
    %v221 = vpack.c.b16 %v201, %v199
    %v222 = vpack.c.b16 %v204, %v202
    %v223 = vpack.c.b16 %v205, %v203
    %v224 = vpack.c.b16 %v208, %v206
    %v225 = vpack.c.b16 %v209, %v207
    %242 = vmatpush.bf16.msra.mxu0 %v224
    %243 = vmatpush.bf16.msra.mxu0 %v222
    %244 = vmatpush.bf16.msra.mxu0 %v220
    %245 = vmatpush.bf16.msra.mxu0 %v218
    %246 = vmatpush.bf16.msra.mxu0 %v216
    %247 = vmatpush.bf16.msra.mxu0 %v214
    %248 = vmatpush.bf16.msra.mxu0 %v212
    %249 = vmatpush.bf16.msra.mxu0 %v210
    %250 = vmatmul.bf16.gmra.mxu0 %v145
    %v251 = vpop.f32.mrf.mxu0
    %v252 = vadd.f32 0.0, %v251
    %v253 = vpop.f32.mrf.mxu0
    %254 = vdwg.mxu0
    %255 = vmatpush.bf16.msra.mxu0 %v225
    %256 = vmatpush.bf16.msra.mxu0 %v223
    %257 = vmatpush.bf16.msra.mxu0 %v221
    %258 = vmatpush.bf16.msra.mxu0 %v219
    %259 = vmatpush.bf16.msra.mxu0 %v217
    %260 = vmatpush.bf16.msra.mxu0 %v215
    %261 = vmatpush.bf16.msra.mxu0 %v213
    %262 = vmatpush.bf16.msra.mxu0 %v211
    %263 = vmatmul.bf16.gmra.mxu0 %v145
    %v264 = vpop.f32.mrf.mxu0
    %v265 = vadd.f32 0.0, %v264
    %v266 = vpop.f32.mrf.mxu0
    %267 = vdwg.mxu0
    %v268 = vpack.c.bf16 %v252, %v252
    %v269 = vld [vmem:[%s1] sm:$0xf]
    %v270 = vpack.c.bf16 %v265, %v265
    %s271 = scalar_lea.vmem %s1, 4
    %v272 = vld [vmem:[%s271] sm:$0xf]
    %vm273 = vcmask 64512
    %v275 = vsel %vm273, %v272, 0
    %vm277 = vcmask 1043456
    %v279 = vsel %vm277, %v270, 0
    %281 = vmatpush.bf16.msra.mxu0 0
    %282 = vmatpush.bf16.msra.mxu0 0
    %283 = vmatpush.bf16.msra.mxu0 0
    %284 = vmatpush.bf16.msra.mxu0 0
    %285 = vmatpush.bf16.msra.mxu0 0
    %286 = vmatpush.bf16.msra.mxu0 0
    %287 = vmatpush.bf16.msra.mxu0 0
    %288 = vmatpush.bf16.msra.mxu0 %v279
    %289 = vmatmul.bf16.gmra.mxu0 %v275
    %v290 = vpop.f32.mrf.mxu0
    %v291 = vadd.f32 0.0, %v290
    %v292 = vpop.f32.mrf.mxu0
    %293 = vdwg.mxu0
    %v295 = vsel %vm273, %v269, 0
    %v298 = vsel %vm277, %v268, 0
    %300 = vmatpush.bf16.msra.mxu0 0
    %301 = vmatpush.bf16.msra.mxu0 0
    %302 = vmatpush.bf16.msra.mxu0 0
    %303 = vmatpush.bf16.msra.mxu0 0
    %304 = vmatpush.bf16.msra.mxu0 0
    %305 = vmatpush.bf16.msra.mxu0 0
    %306 = vmatpush.bf16.msra.mxu0 0
    %307 = vmatpush.bf16.msra.mxu0 %v298
    %308 = vmatmul.bf16.gmra.mxu0 %v295
    %v309 = vpop.f32.mrf.mxu0
    %v310 = vadd.f32 %v291, %v309
    %v311 = vpop.f32.mrf.mxu0
    %312 = vdwg.mxu0
    %v313 = vld [vmem:[%s5] sm:$0x1]
    %v315 = vperm.slane %v313, 0
    %v317 = vadd.f32 %v310, %v315
    %v318 = vmax.f32 %v317, 0.0
    %v319 = vpack.c.bf16 %v318, %v318
    %v320 = vld [vmem:[%s6] sm:$0xff]
    %v321 = vld [vmem:[%s6 + $0x8] sm:$0xff]
    %v322 = vld [vmem:[%s6 + $0x10] sm:$0xff]
    %v323 = vld [vmem:[%s6 + $0x18] sm:$0xff]
    %v324 = vld [vmem:[%s6 + $0x20] sm:$0xff]
    %v325 = vld [vmem:[%s6 + $0x28] sm:$0xff]
    %v326 = vld [vmem:[%s6 + $0x30] sm:$0xff]
    %v327 = vld [vmem:[%s6 + $0x38] sm:$0xff]
    %v328 = vld [vmem:[%s6 + $0x40] sm:$0xff]
    %v329 = vld [vmem:[%s6 + $0x48] sm:$0xff]
    %v330 = vld [vmem:[%s6 + $0x50] sm:$0xff]
    %v331 = vld [vmem:[%s6 + $0x58] sm:$0xff]
    %v332 = vld [vmem:[%s6 + $0x60] sm:$0xff]
    %v333 = vld [vmem:[%s6 + $0x68] sm:$0xff]
    %v334 = vld [vmem:[%s6 + $0x70] sm:$0xff]
    %v335 = vld [vmem:[%s6 + $0x78] sm:$0xff]
    %v352 = vunpack.c.l.b16 %v320
    %v353 = vunpack.c.h.b16 %v320
    %v354 = vunpack.c.l.b16 %v321
    %v355 = vunpack.c.h.b16 %v321
    %v356 = vunpack.c.l.b16 %v322
    %v357 = vunpack.c.h.b16 %v322
    %v358 = vunpack.c.l.b16 %v323
    %v359 = vunpack.c.h.b16 %v323
    %v360 = vunpack.c.l.b16 %v324
    %v361 = vunpack.c.h.b16 %v324
    %v362 = vunpack.c.l.b16 %v325
    %v363 = vunpack.c.h.b16 %v325
    %v364 = vunpack.c.l.b16 %v326
    %v365 = vunpack.c.h.b16 %v326
    %v366 = vunpack.c.l.b16 %v327
    %v367 = vunpack.c.h.b16 %v327
    %v368 = vunpack.c.l.b16 %v328
    %v369 = vunpack.c.h.b16 %v328
    %v370 = vunpack.c.l.b16 %v329
    %v371 = vunpack.c.h.b16 %v329
    %v372 = vunpack.c.l.b16 %v330
    %v373 = vunpack.c.h.b16 %v330
    %v374 = vunpack.c.l.b16 %v331
    %v375 = vunpack.c.h.b16 %v331
    %v376 = vunpack.c.l.b16 %v332
    %v377 = vunpack.c.h.b16 %v332
    %v378 = vunpack.c.l.b16 %v333
    %v379 = vunpack.c.h.b16 %v333
    %v380 = vunpack.c.l.b16 %v334
    %v381 = vunpack.c.h.b16 %v334
    %v382 = vunpack.c.l.b16 %v335
    %v383 = vunpack.c.h.b16 %v335
    %v384 = vpack.c.b16 %v354, %v352
    %v385 = vpack.c.b16 %v355, %v353
    %v386 = vpack.c.b16 %v358, %v356
    %v387 = vpack.c.b16 %v359, %v357
    %v388 = vpack.c.b16 %v362, %v360
    %v389 = vpack.c.b16 %v363, %v361
    %v390 = vpack.c.b16 %v366, %v364
    %v391 = vpack.c.b16 %v367, %v365
    %v392 = vpack.c.b16 %v370, %v368
    %v393 = vpack.c.b16 %v371, %v369
    %v394 = vpack.c.b16 %v374, %v372
    %v395 = vpack.c.b16 %v375, %v373
    %v396 = vpack.c.b16 %v378, %v376
    %v397 = vpack.c.b16 %v379, %v377
    %v398 = vpack.c.b16 %v382, %v380
    %v399 = vpack.c.b16 %v383, %v381
    %416 = vmatpush.bf16.msra.mxu0 %v398
    %417 = vmatpush.bf16.msra.mxu0 %v396
    %418 = vmatpush.bf16.msra.mxu0 %v394
    %419 = vmatpush.bf16.msra.mxu0 %v392
    %420 = vmatpush.bf16.msra.mxu0 %v390
    %421 = vmatpush.bf16.msra.mxu0 %v388
    %422 = vmatpush.bf16.msra.mxu0 %v386
    %423 = vmatpush.bf16.msra.mxu0 %v384
    %424 = vmatmul.bf16.gmra.mxu0 %v319
    %v425 = vpop.f32.mrf.mxu0
    %v426 = vadd.f32 0.0, %v425
    %v427 = vpop.f32.mrf.mxu0
    %428 = vdwg.mxu0
    %429 = vmatpush.bf16.msra.mxu0 %v399
    %430 = vmatpush.bf16.msra.mxu0 %v397
    %431 = vmatpush.bf16.msra.mxu0 %v395
    %432 = vmatpush.bf16.msra.mxu0 %v393
    %433 = vmatpush.bf16.msra.mxu0 %v391
    %434 = vmatpush.bf16.msra.mxu0 %v389
    %435 = vmatpush.bf16.msra.mxu0 %v387
    %436 = vmatpush.bf16.msra.mxu0 %v385
    %437 = vmatmul.bf16.gmra.mxu0 %v319
    %v438 = vpop.f32.mrf.mxu0
    %v439 = vadd.f32 0.0, %v438
    %v440 = vpop.f32.mrf.mxu0
    %441 = vdwg.mxu0
    %v442 = vpack.c.bf16 %v426, %v426
    %v443 = vpack.c.bf16 %v439, %v439
    %v445 = vsel %vm277, %v443, 0
    %447 = vmatpush.bf16.msra.mxu0 0
    %448 = vmatpush.bf16.msra.mxu0 0
    %449 = vmatpush.bf16.msra.mxu0 0
    %450 = vmatpush.bf16.msra.mxu0 0
    %451 = vmatpush.bf16.msra.mxu0 0
    %452 = vmatpush.bf16.msra.mxu0 0
    %453 = vmatpush.bf16.msra.mxu0 0
    %454 = vmatpush.bf16.msra.mxu0 %v445
    %455 = vmatmul.bf16.gmra.mxu0 %v275
    %v456 = vpop.f32.mrf.mxu0
    %v457 = vadd.f32 0.0, %v456
    %v458 = vpop.f32.mrf.mxu0
    %459 = vdwg.mxu0
    %v461 = vsel %vm277, %v442, 0
    %463 = vmatpush.bf16.msra.mxu0 0
    %464 = vmatpush.bf16.msra.mxu0 0
    %465 = vmatpush.bf16.msra.mxu0 0
    %466 = vmatpush.bf16.msra.mxu0 0
    %467 = vmatpush.bf16.msra.mxu0 0
    %468 = vmatpush.bf16.msra.mxu0 0
    %469 = vmatpush.bf16.msra.mxu0 0
    %470 = vmatpush.bf16.msra.mxu0 %v461
    %471 = vmatmul.bf16.gmra.mxu0 %v295
    %v472 = vpop.f32.mrf.mxu0
    %v473 = vadd.f32 %v457, %v472
    %v474 = vpop.f32.mrf.mxu0
    %475 = vdwg.mxu0
    %v476 = vld [vmem:[%s7] sm:$0x1]
    %v478 = vperm.slane %v476, 0
    %v480 = vadd.f32 %v473, %v478
    %v481 = vmax.f32 %v480, 0.0
    %v482 = vpack.c.bf16 %v481, %v481
    %v483 = vld [vmem:[%s8] sm:$0xff]
    %v484 = vld [vmem:[%s8 + $0x8] sm:$0xff]
    %v485 = vld [vmem:[%s8 + $0x10] sm:$0xff]
    %v486 = vld [vmem:[%s8 + $0x18] sm:$0xff]
    %v487 = vld [vmem:[%s8 + $0x20] sm:$0xff]
    %v488 = vld [vmem:[%s8 + $0x28] sm:$0xff]
    %v489 = vld [vmem:[%s8 + $0x30] sm:$0xff]
    %v490 = vld [vmem:[%s8 + $0x38] sm:$0xff]
    %v491 = vld [vmem:[%s8 + $0x40] sm:$0xff]
    %v492 = vld [vmem:[%s8 + $0x48] sm:$0xff]
    %v493 = vld [vmem:[%s8 + $0x50] sm:$0xff]
    %v494 = vld [vmem:[%s8 + $0x58] sm:$0xff]
    %v495 = vld [vmem:[%s8 + $0x60] sm:$0xff]
    %v496 = vld [vmem:[%s8 + $0x68] sm:$0xff]
    %v497 = vld [vmem:[%s8 + $0x70] sm:$0xff]
    %v498 = vld [vmem:[%s8 + $0x78] sm:$0xff]
    %v499 = vld [vmem:[%s8 + $0x80] sm:$0xff]
    %v500 = vld [vmem:[%s8 + $0x88] sm:$0xff]
    %v501 = vld [vmem:[%s8 + $0x90] sm:$0xff]
    %v502 = vld [vmem:[%s8 + $0x98] sm:$0xff]
    %v503 = vld [vmem:[%s8 + $0xa0] sm:$0xff]
    %v504 = vld [vmem:[%s8 + $0xa8] sm:$0xff]
    %v505 = vld [vmem:[%s8 + $0xb0] sm:$0xff]
    %v506 = vld [vmem:[%s8 + $0xb8] sm:$0xff]
    %v507 = vld [vmem:[%s8 + $0xc0] sm:$0xff]
    %v508 = vld [vmem:[%s8 + $0xc8] sm:$0xff]
    %v509 = vld [vmem:[%s8 + $0xd0] sm:$0xff]
    %v510 = vld [vmem:[%s8 + $0xd8] sm:$0xff]
    %v511 = vld [vmem:[%s8 + $0xe0] sm:$0xff]
    %v512 = vld [vmem:[%s8 + $0xe8] sm:$0xff]
    %v513 = vld [vmem:[%s8 + $0xf0] sm:$0xff]
    %v514 = vld [vmem:[%s8 + $0xf8] sm:$0xff]
    %v531 = vunpack.c.l.b16 %v499
    %v532 = vunpack.c.h.b16 %v499
    %v533 = vunpack.c.l.b16 %v500
    %v534 = vunpack.c.h.b16 %v500
    %v535 = vunpack.c.l.b16 %v501
    %v536 = vunpack.c.h.b16 %v501
    %v537 = vunpack.c.l.b16 %v502
    %v538 = vunpack.c.h.b16 %v502
    %v539 = vunpack.c.l.b16 %v503
    %v540 = vunpack.c.h.b16 %v503
    %v541 = vunpack.c.l.b16 %v504
    %v542 = vunpack.c.h.b16 %v504
    %v543 = vunpack.c.l.b16 %v505
    %v544 = vunpack.c.h.b16 %v505
    %v545 = vunpack.c.l.b16 %v506
    %v546 = vunpack.c.h.b16 %v506
    %v547 = vunpack.c.l.b16 %v507
    %v548 = vunpack.c.h.b16 %v507
    %v549 = vunpack.c.l.b16 %v508
    %v550 = vunpack.c.h.b16 %v508
    %v551 = vunpack.c.l.b16 %v509
    %v552 = vunpack.c.h.b16 %v509
    %v553 = vunpack.c.l.b16 %v510
    %v554 = vunpack.c.h.b16 %v510
    %v555 = vunpack.c.l.b16 %v511
    %v556 = vunpack.c.h.b16 %v511
    %v557 = vunpack.c.l.b16 %v512
    %v558 = vunpack.c.h.b16 %v512
    %v559 = vunpack.c.l.b16 %v513
    %v560 = vunpack.c.h.b16 %v513
    %v561 = vunpack.c.l.b16 %v514
    %v562 = vunpack.c.h.b16 %v514
    %v563 = vpack.c.b16 %v533, %v531
    %v564 = vpack.c.b16 %v534, %v532
    %v565 = vpack.c.b16 %v537, %v535
    %v566 = vpack.c.b16 %v538, %v536
    %v567 = vpack.c.b16 %v541, %v539
    %v568 = vpack.c.b16 %v542, %v540
    %v569 = vpack.c.b16 %v545, %v543
    %v570 = vpack.c.b16 %v546, %v544
    %v571 = vpack.c.b16 %v549, %v547
    %v572 = vpack.c.b16 %v550, %v548
    %v573 = vpack.c.b16 %v553, %v551
    %v574 = vpack.c.b16 %v554, %v552
    %v575 = vpack.c.b16 %v557, %v555
    %v576 = vpack.c.b16 %v558, %v556
    %v577 = vpack.c.b16 %v561, %v559
    %v578 = vpack.c.b16 %v562, %v560
    %595 = vmatpush.bf16.msra.mxu0 %v577
    %596 = vmatpush.bf16.msra.mxu0 %v575
    %597 = vmatpush.bf16.msra.mxu0 %v573
    %598 = vmatpush.bf16.msra.mxu0 %v571
    %599 = vmatpush.bf16.msra.mxu0 %v569
    %600 = vmatpush.bf16.msra.mxu0 %v567
    %601 = vmatpush.bf16.msra.mxu0 %v565
    %602 = vmatpush.bf16.msra.mxu0 %v563
    %603 = vmatmul.bf16.gmra.mxu0 %v319
    %v604 = vpop.f32.mrf.mxu0
    %v605 = vadd.f32 0.0, %v604
    %v606 = vpop.f32.mrf.mxu0
    %607 = vdwg.mxu0
    %608 = vmatpush.bf16.msra.mxu0 %v578
    %609 = vmatpush.bf16.msra.mxu0 %v576
    %610 = vmatpush.bf16.msra.mxu0 %v574
    %611 = vmatpush.bf16.msra.mxu0 %v572
    %612 = vmatpush.bf16.msra.mxu0 %v570
    %613 = vmatpush.bf16.msra.mxu0 %v568
    %614 = vmatpush.bf16.msra.mxu0 %v566
    %615 = vmatpush.bf16.msra.mxu0 %v564
    %616 = vmatmul.bf16.gmra.mxu0 %v319
    %v617 = vpop.f32.mrf.mxu0
    %v618 = vadd.f32 0.0, %v617
    %v619 = vpop.f32.mrf.mxu0
    %620 = vdwg.mxu0
    %v637 = vunpack.c.l.b16 %v483
    %v638 = vunpack.c.h.b16 %v483
    %v639 = vunpack.c.l.b16 %v484
    %v640 = vunpack.c.h.b16 %v484
    %v641 = vunpack.c.l.b16 %v485
    %v642 = vunpack.c.h.b16 %v485
    %v643 = vunpack.c.l.b16 %v486
    %v644 = vunpack.c.h.b16 %v486
    %v645 = vunpack.c.l.b16 %v487
    %v646 = vunpack.c.h.b16 %v487
    %v647 = vunpack.c.l.b16 %v488
    %v648 = vunpack.c.h.b16 %v488
    %v649 = vunpack.c.l.b16 %v489
    %v650 = vunpack.c.h.b16 %v489
    %v651 = vunpack.c.l.b16 %v490
    %v652 = vunpack.c.h.b16 %v490
    %v653 = vunpack.c.l.b16 %v491
    %v654 = vunpack.c.h.b16 %v491
    %v655 = vunpack.c.l.b16 %v492
    %v656 = vunpack.c.h.b16 %v492
    %v657 = vunpack.c.l.b16 %v493
    %v658 = vunpack.c.h.b16 %v493
    %v659 = vunpack.c.l.b16 %v494
    %v660 = vunpack.c.h.b16 %v494
    %v661 = vunpack.c.l.b16 %v495
    %v662 = vunpack.c.h.b16 %v495
    %v663 = vunpack.c.l.b16 %v496
    %v664 = vunpack.c.h.b16 %v496
    %v665 = vunpack.c.l.b16 %v497
    %v666 = vunpack.c.h.b16 %v497
    %v667 = vunpack.c.l.b16 %v498
    %v668 = vunpack.c.h.b16 %v498
    %v669 = vpack.c.b16 %v639, %v637
    %v670 = vpack.c.b16 %v640, %v638
    %v671 = vpack.c.b16 %v643, %v641
    %v672 = vpack.c.b16 %v644, %v642
    %v673 = vpack.c.b16 %v647, %v645
    %v674 = vpack.c.b16 %v648, %v646
    %v675 = vpack.c.b16 %v651, %v649
    %v676 = vpack.c.b16 %v652, %v650
    %v677 = vpack.c.b16 %v655, %v653
    %v678 = vpack.c.b16 %v656, %v654
    %v679 = vpack.c.b16 %v659, %v657
    %v680 = vpack.c.b16 %v660, %v658
    %v681 = vpack.c.b16 %v663, %v661
    %v682 = vpack.c.b16 %v664, %v662
    %v683 = vpack.c.b16 %v667, %v665
    %v684 = vpack.c.b16 %v668, %v666
    %701 = vmatpush.bf16.msra.mxu0 %v683
    %702 = vmatpush.bf16.msra.mxu0 %v681
    %703 = vmatpush.bf16.msra.mxu0 %v679
    %704 = vmatpush.bf16.msra.mxu0 %v677
    %705 = vmatpush.bf16.msra.mxu0 %v675
    %706 = vmatpush.bf16.msra.mxu0 %v673
    %707 = vmatpush.bf16.msra.mxu0 %v671
    %708 = vmatpush.bf16.msra.mxu0 %v669
    %709 = vmatmul.bf16.gmra.mxu0 %v482
    %v710 = vpop.f32.mrf.mxu0
    %v711 = vadd.f32 %v605, %v710
    %v712 = vpop.f32.mrf.mxu0
    %713 = vdwg.mxu0
    %714 = vmatpush.bf16.msra.mxu0 %v684
    %715 = vmatpush.bf16.msra.mxu0 %v682
    %716 = vmatpush.bf16.msra.mxu0 %v680
    %717 = vmatpush.bf16.msra.mxu0 %v678
    %718 = vmatpush.bf16.msra.mxu0 %v676
    %719 = vmatpush.bf16.msra.mxu0 %v674
    %720 = vmatpush.bf16.msra.mxu0 %v672
    %721 = vmatpush.bf16.msra.mxu0 %v670
    %722 = vmatmul.bf16.gmra.mxu0 %v482
    %v723 = vpop.f32.mrf.mxu0
    %v724 = vadd.f32 %v618, %v723
    %v725 = vpop.f32.mrf.mxu0
    %726 = vdwg.mxu0
    %v727 = vpack.c.bf16 %v711, %v711
    %v728 = vpack.c.bf16 %v724, %v724
    %v730 = vsel %vm277, %v728, 0
    %732 = vmatpush.bf16.msra.mxu0 0
    %733 = vmatpush.bf16.msra.mxu0 0
    %734 = vmatpush.bf16.msra.mxu0 0
    %735 = vmatpush.bf16.msra.mxu0 0
    %736 = vmatpush.bf16.msra.mxu0 0
    %737 = vmatpush.bf16.msra.mxu0 0
    %738 = vmatpush.bf16.msra.mxu0 0
    %739 = vmatpush.bf16.msra.mxu0 %v730
    %740 = vmatmul.bf16.gmra.mxu0 %v275
    %v741 = vpop.f32.mrf.mxu0
    %v742 = vadd.f32 0.0, %v741
    %v743 = vpop.f32.mrf.mxu0
    %744 = vdwg.mxu0
    %v746 = vsel %vm277, %v727, 0
    %748 = vmatpush.bf16.msra.mxu0 0
    %749 = vmatpush.bf16.msra.mxu0 0
    %750 = vmatpush.bf16.msra.mxu0 0
    %751 = vmatpush.bf16.msra.mxu0 0
    %752 = vmatpush.bf16.msra.mxu0 0
    %753 = vmatpush.bf16.msra.mxu0 0
    %754 = vmatpush.bf16.msra.mxu0 0
    %755 = vmatpush.bf16.msra.mxu0 %v746
    %756 = vmatmul.bf16.gmra.mxu0 %v295
    %v757 = vpop.f32.mrf.mxu0
    %v758 = vadd.f32 %v742, %v757
    %v759 = vpop.f32.mrf.mxu0
    %760 = vdwg.mxu0
    %v761 = vld [vmem:[%s9] sm:$0x1]
    %v763 = vperm.slane %v761, 0
    %v765 = vadd.f32 %v758, %v763
    %v766 = vmax.f32 %v765, 0.0
    %v767 = vpack.c.bf16 %v766, %v766
    %v768 = vld [vmem:[%s10] sm:$0xf]
    %v769 = vld [vmem:[%s10 + $0x4] sm:$0xf]
    %v770 = vld [vmem:[%s10 + $0x8] sm:$0xf]
    %v771 = vld [vmem:[%s10 + $0xc] sm:$0xf]
    %v772 = vld [vmem:[%s10 + $0x10] sm:$0xf]
    %v773 = vld [vmem:[%s10 + $0x14] sm:$0xf]
    %v774 = vld [vmem:[%s10 + $0x18] sm:$0xf]
    %v775 = vld [vmem:[%s10 + $0x1c] sm:$0xf]
    %v776 = vld [vmem:[%s10 + $0x20] sm:$0xf]
    %v777 = vld [vmem:[%s10 + $0x24] sm:$0xf]
    %v778 = vld [vmem:[%s10 + $0x28] sm:$0xf]
    %v779 = vld [vmem:[%s10 + $0x2c] sm:$0xf]
    %v780 = vld [vmem:[%s10 + $0x30] sm:$0xf]
    %v781 = vld [vmem:[%s10 + $0x34] sm:$0xf]
    %v782 = vld [vmem:[%s10 + $0x38] sm:$0xf]
    %v783 = vld [vmem:[%s10 + $0x3c] sm:$0xf]
    %v784 = vld [vmem:[%s10 + $0x40] sm:$0xf]
    %v785 = vld [vmem:[%s10 + $0x44] sm:$0xf]
    %v786 = vld [vmem:[%s10 + $0x48] sm:$0xf]
    %v787 = vld [vmem:[%s10 + $0x4c] sm:$0xf]
    %v788 = vld [vmem:[%s10 + $0x50] sm:$0xf]
    %v789 = vld [vmem:[%s10 + $0x54] sm:$0xf]
    %v790 = vld [vmem:[%s10 + $0x58] sm:$0xf]
    %v791 = vld [vmem:[%s10 + $0x5c] sm:$0xf]
    %v792 = vld [vmem:[%s10 + $0x60] sm:$0xf]
    %v793 = vld [vmem:[%s10 + $0x64] sm:$0xf]
    %v794 = vld [vmem:[%s10 + $0x68] sm:$0xf]
    %v795 = vld [vmem:[%s10 + $0x6c] sm:$0xf]
    %v796 = vld [vmem:[%s10 + $0x70] sm:$0xf]
    %v797 = vld [vmem:[%s10 + $0x74] sm:$0xf]
    %v798 = vld [vmem:[%s10 + $0x78] sm:$0xf]
    %v799 = vld [vmem:[%s10 + $0x7c] sm:$0xf]
    %v816 = vunpack.c.l.b16 %v784
    %v817 = vunpack.c.l.b16 %v785
    %v818 = vunpack.c.l.b16 %v786
    %v819 = vunpack.c.l.b16 %v787
    %v820 = vunpack.c.l.b16 %v788
    %v821 = vunpack.c.l.b16 %v789
    %v822 = vunpack.c.l.b16 %v790
    %v823 = vunpack.c.l.b16 %v791
    %v824 = vunpack.c.l.b16 %v792
    %v825 = vunpack.c.l.b16 %v793
    %v826 = vunpack.c.l.b16 %v794
    %v827 = vunpack.c.l.b16 %v795
    %v828 = vunpack.c.l.b16 %v796
    %v829 = vunpack.c.l.b16 %v797
    %v830 = vunpack.c.l.b16 %v798
    %v831 = vunpack.c.l.b16 %v799
    %v832 = vpack.c.b16 %v817, %v816
    %v833 = vpack.c.b16 %v819, %v818
    %v834 = vpack.c.b16 %v821, %v820
    %v835 = vpack.c.b16 %v823, %v822
    %v836 = vpack.c.b16 %v825, %v824
    %v837 = vpack.c.b16 %v827, %v826
    %v838 = vpack.c.b16 %v829, %v828
    %v839 = vpack.c.b16 %v831, %v830
    %848 = vmatpush.bf16.msra.mxu0 %v839
    %849 = vmatpush.bf16.msra.mxu0 %v838
    %850 = vmatpush.bf16.msra.mxu0 %v837
    %851 = vmatpush.bf16.msra.mxu0 %v836
    %852 = vmatpush.bf16.msra.mxu0 %v835
    %853 = vmatpush.bf16.msra.mxu0 %v834
    %854 = vmatpush.bf16.msra.mxu0 %v833
    %855 = vmatpush.bf16.msra.mxu0 %v832
    %856 = vmatmul.bf16.gmra.mxu0 %v319
    %v857 = vpop.f32.mrf.mxu0
    %v858 = vadd.f32 0.0, %v857
    %v859 = vpop.f32.mrf.mxu0
    %860 = vdwg.mxu0
    %v877 = vunpack.c.l.b16 %v768
    %v878 = vunpack.c.l.b16 %v769
    %v879 = vunpack.c.l.b16 %v770
    %v880 = vunpack.c.l.b16 %v771
    %v881 = vunpack.c.l.b16 %v772
    %v882 = vunpack.c.l.b16 %v773
    %v883 = vunpack.c.l.b16 %v774
    %v884 = vunpack.c.l.b16 %v775
    %v885 = vunpack.c.l.b16 %v776
    %v886 = vunpack.c.l.b16 %v777
    %v887 = vunpack.c.l.b16 %v778
    %v888 = vunpack.c.l.b16 %v779
    %v889 = vunpack.c.l.b16 %v780
    %v890 = vunpack.c.l.b16 %v781
    %v891 = vunpack.c.l.b16 %v782
    %v892 = vunpack.c.l.b16 %v783
    %v893 = vpack.c.b16 %v878, %v877
    %v894 = vpack.c.b16 %v880, %v879
    %v895 = vpack.c.b16 %v882, %v881
    %v896 = vpack.c.b16 %v884, %v883
    %v897 = vpack.c.b16 %v886, %v885
    %v898 = vpack.c.b16 %v888, %v887
    %v899 = vpack.c.b16 %v890, %v889
    %v900 = vpack.c.b16 %v892, %v891
    %909 = vmatpush.bf16.msra.mxu0 %v900
    %910 = vmatpush.bf16.msra.mxu0 %v899
    %911 = vmatpush.bf16.msra.mxu0 %v898
    %912 = vmatpush.bf16.msra.mxu0 %v897
    %913 = vmatpush.bf16.msra.mxu0 %v896
    %914 = vmatpush.bf16.msra.mxu0 %v895
    %915 = vmatpush.bf16.msra.mxu0 %v894
    %916 = vmatpush.bf16.msra.mxu0 %v893
    %917 = vmatmul.bf16.gmra.mxu0 %v767
    %v918 = vpop.f32.mrf.mxu0
    %v919 = vadd.f32 %v858, %v918
    %v920 = vpop.f32.mrf.mxu0
    %921 = vdwg.mxu0
    %v922 = vld [vmem:[%s11] sm:$0x1]
    %v924 = vperm.slane %v922, 0
    %v926 = vadd.f32 %v919, %v924
    %v927 = vpack.c.bf16 %v926, %v926
    %v928 = vld [vmem:[%s12] sm:$0xff]
    %v929 = vld [vmem:[%s12 + $0x8] sm:$0xff]
    %v930 = vld [vmem:[%s12 + $0x10] sm:$0xff]
    %v931 = vld [vmem:[%s12 + $0x18] sm:$0xff]
    %v932 = vld [vmem:[%s12 + $0x20] sm:$0xff]
    %v933 = vld [vmem:[%s12 + $0x28] sm:$0xff]
    %v934 = vld [vmem:[%s12 + $0x30] sm:$0xff]
    %v935 = vld [vmem:[%s12 + $0x38] sm:$0xff]
    %v936 = vld [vmem:[%s12 + $0x40] sm:$0xff]
    %v937 = vld [vmem:[%s12 + $0x48] sm:$0xff]
    %v938 = vld [vmem:[%s12 + $0x50] sm:$0xff]
    %v939 = vld [vmem:[%s12 + $0x58] sm:$0xff]
    %v940 = vld [vmem:[%s12 + $0x60] sm:$0xff]
    %v941 = vld [vmem:[%s12 + $0x68] sm:$0xff]
    %v942 = vld [vmem:[%s12 + $0x70] sm:$0xff]
    %v943 = vld [vmem:[%s12 + $0x78] sm:$0xff]
    %v960 = vunpack.c.l.b16 %v928
    %v961 = vunpack.c.h.b16 %v928
    %v962 = vunpack.c.l.b16 %v929
    %v963 = vunpack.c.h.b16 %v929
    %v964 = vunpack.c.l.b16 %v930
    %v965 = vunpack.c.h.b16 %v930
    %v966 = vunpack.c.l.b16 %v931
    %v967 = vunpack.c.h.b16 %v931
    %v968 = vunpack.c.l.b16 %v932
    %v969 = vunpack.c.h.b16 %v932
    %v970 = vunpack.c.l.b16 %v933
    %v971 = vunpack.c.h.b16 %v933
    %v972 = vunpack.c.l.b16 %v934
    %v973 = vunpack.c.h.b16 %v934
    %v974 = vunpack.c.l.b16 %v935
    %v975 = vunpack.c.h.b16 %v935
    %v976 = vunpack.c.l.b16 %v936
    %v977 = vunpack.c.h.b16 %v936
    %v978 = vunpack.c.l.b16 %v937
    %v979 = vunpack.c.h.b16 %v937
    %v980 = vunpack.c.l.b16 %v938
    %v981 = vunpack.c.h.b16 %v938
    %v982 = vunpack.c.l.b16 %v939
    %v983 = vunpack.c.h.b16 %v939
    %v984 = vunpack.c.l.b16 %v940
    %v985 = vunpack.c.h.b16 %v940
    %v986 = vunpack.c.l.b16 %v941
    %v987 = vunpack.c.h.b16 %v941
    %v988 = vunpack.c.l.b16 %v942
    %v989 = vunpack.c.h.b16 %v942
    %v990 = vunpack.c.l.b16 %v943
    %v991 = vunpack.c.h.b16 %v943
    %v992 = vpack.c.b16 %v962, %v960
    %v993 = vpack.c.b16 %v963, %v961
    %v994 = vpack.c.b16 %v966, %v964
    %v995 = vpack.c.b16 %v967, %v965
    %v996 = vpack.c.b16 %v970, %v968
    %v997 = vpack.c.b16 %v971, %v969
    %v998 = vpack.c.b16 %v974, %v972
    %v999 = vpack.c.b16 %v975, %v973
    %v1000 = vpack.c.b16 %v978, %v976
    %v1001 = vpack.c.b16 %v979, %v977
    %v1002 = vpack.c.b16 %v982, %v980
    %v1003 = vpack.c.b16 %v983, %v981
    %v1004 = vpack.c.b16 %v986, %v984
    %v1005 = vpack.c.b16 %v987, %v985
    %v1006 = vpack.c.b16 %v990, %v988
    %v1007 = vpack.c.b16 %v991, %v989
    %1024 = vmatpush.bf16.msra.mxu0 %v1006
    %1025 = vmatpush.bf16.msra.mxu0 %v1004
    %1026 = vmatpush.bf16.msra.mxu0 %v1002
    %1027 = vmatpush.bf16.msra.mxu0 %v1000
    %1028 = vmatpush.bf16.msra.mxu0 %v998
    %1029 = vmatpush.bf16.msra.mxu0 %v996
    %1030 = vmatpush.bf16.msra.mxu0 %v994
    %1031 = vmatpush.bf16.msra.mxu0 %v992
    %1032 = vmatmul.bf16.gmra.mxu0 %v927
    %v1033 = vpop.f32.mrf.mxu0
    %v1034 = vadd.f32 0.0, %v1033
    %v1035 = vpop.f32.mrf.mxu0
    %1036 = vdwg.mxu0
    %1037 = vmatpush.bf16.msra.mxu0 %v1007
    %1038 = vmatpush.bf16.msra.mxu0 %v1005
    %1039 = vmatpush.bf16.msra.mxu0 %v1003
    %1040 = vmatpush.bf16.msra.mxu0 %v1001
    %1041 = vmatpush.bf16.msra.mxu0 %v999
    %1042 = vmatpush.bf16.msra.mxu0 %v997
    %1043 = vmatpush.bf16.msra.mxu0 %v995
    %1044 = vmatpush.bf16.msra.mxu0 %v993
    %1045 = vmatmul.bf16.gmra.mxu0 %v927
    %v1046 = vpop.f32.mrf.mxu0
    %v1047 = vadd.f32 0.0, %v1046
    %v1048 = vpop.f32.mrf.mxu0
    %1049 = vdwg.mxu0
    %v1050 = vpack.c.bf16 %v1034, %v1034
    %v1051 = vpack.c.bf16 %v1047, %v1047
    %v1053 = vsel %vm277, %v1051, 0
    %1055 = vmatpush.bf16.msra.mxu0 0
    %1056 = vmatpush.bf16.msra.mxu0 0
    %1057 = vmatpush.bf16.msra.mxu0 0
    %1058 = vmatpush.bf16.msra.mxu0 0
    %1059 = vmatpush.bf16.msra.mxu0 0
    %1060 = vmatpush.bf16.msra.mxu0 0
    %1061 = vmatpush.bf16.msra.mxu0 0
    %1062 = vmatpush.bf16.msra.mxu0 %v1053
    %1063 = vmatmul.bf16.gmra.mxu0 %v275
    %v1064 = vpop.f32.mrf.mxu0
    %v1065 = vadd.f32 0.0, %v1064
    %v1066 = vpop.f32.mrf.mxu0
    %1067 = vdwg.mxu0
    %v1069 = vsel %vm277, %v1050, 0
    %1071 = vmatpush.bf16.msra.mxu0 0
    %1072 = vmatpush.bf16.msra.mxu0 0
    %1073 = vmatpush.bf16.msra.mxu0 0
    %1074 = vmatpush.bf16.msra.mxu0 0
    %1075 = vmatpush.bf16.msra.mxu0 0
    %1076 = vmatpush.bf16.msra.mxu0 0
    %1077 = vmatpush.bf16.msra.mxu0 0
    %1078 = vmatpush.bf16.msra.mxu0 %v1069
    %1079 = vmatmul.bf16.gmra.mxu0 %v295
    %v1080 = vpop.f32.mrf.mxu0
    %v1081 = vadd.f32 %v1065, %v1080
    %v1082 = vpop.f32.mrf.mxu0
    %1083 = vdwg.mxu0
    %v1084 = vld [vmem:[%s13] sm:$0x1]
    %v1086 = vperm.slane %v1084, 0
    %v1088 = vadd.f32 %v1081, %v1086
    %v1089 = vmax.f32 %v1088, 0.0
    %v1090 = vpack.c.bf16 %v1089, %v1089
    %v1091 = vld [vmem:[%s14] sm:$0xff]
    %v1092 = vld [vmem:[%s14 + $0x8] sm:$0xff]
    %v1093 = vld [vmem:[%s14 + $0x10] sm:$0xff]
    %v1094 = vld [vmem:[%s14 + $0x18] sm:$0xff]
    %v1095 = vld [vmem:[%s14 + $0x20] sm:$0xff]
    %v1096 = vld [vmem:[%s14 + $0x28] sm:$0xff]
    %v1097 = vld [vmem:[%s14 + $0x30] sm:$0xff]
    %v1098 = vld [vmem:[%s14 + $0x38] sm:$0xff]
    %v1099 = vld [vmem:[%s14 + $0x40] sm:$0xff]
    %v1100 = vld [vmem:[%s14 + $0x48] sm:$0xff]
    %v1101 = vld [vmem:[%s14 + $0x50] sm:$0xff]
    %v1102 = vld [vmem:[%s14 + $0x58] sm:$0xff]
    %v1103 = vld [vmem:[%s14 + $0x60] sm:$0xff]
    %v1104 = vld [vmem:[%s14 + $0x68] sm:$0xff]
    %v1105 = vld [vmem:[%s14 + $0x70] sm:$0xff]
    %v1106 = vld [vmem:[%s14 + $0x78] sm:$0xff]
    %v1123 = vunpack.c.l.b16 %v1091
    %v1124 = vunpack.c.h.b16 %v1091
    %v1125 = vunpack.c.l.b16 %v1092
    %v1126 = vunpack.c.h.b16 %v1092
    %v1127 = vunpack.c.l.b16 %v1093
    %v1128 = vunpack.c.h.b16 %v1093
    %v1129 = vunpack.c.l.b16 %v1094
    %v1130 = vunpack.c.h.b16 %v1094
    %v1131 = vunpack.c.l.b16 %v1095
    %v1132 = vunpack.c.h.b16 %v1095
    %v1133 = vunpack.c.l.b16 %v1096
    %v1134 = vunpack.c.h.b16 %v1096
    %v1135 = vunpack.c.l.b16 %v1097
    %v1136 = vunpack.c.h.b16 %v1097
    %v1137 = vunpack.c.l.b16 %v1098
    %v1138 = vunpack.c.h.b16 %v1098
    %v1139 = vunpack.c.l.b16 %v1099
    %v1140 = vunpack.c.h.b16 %v1099
    %v1141 = vunpack.c.l.b16 %v1100
    %v1142 = vunpack.c.h.b16 %v1100
    %v1143 = vunpack.c.l.b16 %v1101
    %v1144 = vunpack.c.h.b16 %v1101
    %v1145 = vunpack.c.l.b16 %v1102
    %v1146 = vunpack.c.h.b16 %v1102
    %v1147 = vunpack.c.l.b16 %v1103
    %v1148 = vunpack.c.h.b16 %v1103
    %v1149 = vunpack.c.l.b16 %v1104
    %v1150 = vunpack.c.h.b16 %v1104
    %v1151 = vunpack.c.l.b16 %v1105
    %v1152 = vunpack.c.h.b16 %v1105
    %v1153 = vunpack.c.l.b16 %v1106
    %v1154 = vunpack.c.h.b16 %v1106
    %v1155 = vpack.c.b16 %v1125, %v1123
    %v1156 = vpack.c.b16 %v1126, %v1124
    %v1157 = vpack.c.b16 %v1129, %v1127
    %v1158 = vpack.c.b16 %v1130, %v1128
    %v1159 = vpack.c.b16 %v1133, %v1131
    %v1160 = vpack.c.b16 %v1134, %v1132
    %v1161 = vpack.c.b16 %v1137, %v1135
    %v1162 = vpack.c.b16 %v1138, %v1136
    %v1163 = vpack.c.b16 %v1141, %v1139
    %v1164 = vpack.c.b16 %v1142, %v1140
    %v1165 = vpack.c.b16 %v1145, %v1143
    %v1166 = vpack.c.b16 %v1146, %v1144
    %v1167 = vpack.c.b16 %v1149, %v1147
    %v1168 = vpack.c.b16 %v1150, %v1148
    %v1169 = vpack.c.b16 %v1153, %v1151
    %v1170 = vpack.c.b16 %v1154, %v1152
    %1187 = vmatpush.bf16.msra.mxu0 %v1169
    %1188 = vmatpush.bf16.msra.mxu0 %v1167
    %1189 = vmatpush.bf16.msra.mxu0 %v1165
    %1190 = vmatpush.bf16.msra.mxu0 %v1163
    %1191 = vmatpush.bf16.msra.mxu0 %v1161
    %1192 = vmatpush.bf16.msra.mxu0 %v1159
    %1193 = vmatpush.bf16.msra.mxu0 %v1157
    %1194 = vmatpush.bf16.msra.mxu0 %v1155
    %1195 = vmatmul.bf16.gmra.mxu0 %v1090
    %v1196 = vpop.f32.mrf.mxu0
    %v1197 = vadd.f32 0.0, %v1196
    %v1198 = vpop.f32.mrf.mxu0
    %1199 = vdwg.mxu0
    %1200 = vmatpush.bf16.msra.mxu0 %v1170
    %1201 = vmatpush.bf16.msra.mxu0 %v1168
    %1202 = vmatpush.bf16.msra.mxu0 %v1166
    %1203 = vmatpush.bf16.msra.mxu0 %v1164
    %1204 = vmatpush.bf16.msra.mxu0 %v1162
    %1205 = vmatpush.bf16.msra.mxu0 %v1160
    %1206 = vmatpush.bf16.msra.mxu0 %v1158
    %1207 = vmatpush.bf16.msra.mxu0 %v1156
    %1208 = vmatmul.bf16.gmra.mxu0 %v1090
    %v1209 = vpop.f32.mrf.mxu0
    %v1210 = vadd.f32 0.0, %v1209
    %v1211 = vpop.f32.mrf.mxu0
    %1212 = vdwg.mxu0
    %v1213 = vpack.c.bf16 %v1197, %v1197
    %v1214 = vpack.c.bf16 %v1210, %v1210
    %v1216 = vsel %vm277, %v1214, 0
    %1218 = vmatpush.bf16.msra.mxu0 0
    %1219 = vmatpush.bf16.msra.mxu0 0
    %1220 = vmatpush.bf16.msra.mxu0 0
    %1221 = vmatpush.bf16.msra.mxu0 0
    %1222 = vmatpush.bf16.msra.mxu0 0
    %1223 = vmatpush.bf16.msra.mxu0 0
    %1224 = vmatpush.bf16.msra.mxu0 0
    %1225 = vmatpush.bf16.msra.mxu0 %v1216
    %1226 = vmatmul.bf16.gmra.mxu0 %v275
    %v1227 = vpop.f32.mrf.mxu0
    %v1228 = vadd.f32 0.0, %v1227
    %v1229 = vpop.f32.mrf.mxu0
    %1230 = vdwg.mxu0
    %v1232 = vsel %vm277, %v1213, 0
    %1234 = vmatpush.bf16.msra.mxu0 0
    %1235 = vmatpush.bf16.msra.mxu0 0
    %1236 = vmatpush.bf16.msra.mxu0 0
    %1237 = vmatpush.bf16.msra.mxu0 0
    %1238 = vmatpush.bf16.msra.mxu0 0
    %1239 = vmatpush.bf16.msra.mxu0 0
    %1240 = vmatpush.bf16.msra.mxu0 0
    %1241 = vmatpush.bf16.msra.mxu0 %v1232
    %1242 = vmatmul.bf16.gmra.mxu0 %v295
    %v1243 = vpop.f32.mrf.mxu0
    %v1244 = vadd.f32 %v1228, %v1243
    %v1245 = vpop.f32.mrf.mxu0
    %1246 = vdwg.mxu0
    %v1247 = vld [vmem:[%s15] sm:$0x1]
    %v1249 = vperm.slane %v1247, 0
    %v1251 = vadd.f32 %v1244, %v1249
    %v1252 = vmax.f32 %v1251, 0.0
    %1253 = vst [vmem:[#allocation2] sm:$0xff] %v1252
    %v1254 = vpack.c.bf16 %v1252, %v1252
    %v1255 = vld [vmem:[%s16] sm:$0xf]
    %v1256 = vld [vmem:[%s16 + $0x4] sm:$0xf]
    %v1257 = vld [vmem:[%s16 + $0x8] sm:$0xf]
    %v1258 = vld [vmem:[%s16 + $0xc] sm:$0xf]
    %v1259 = vld [vmem:[%s16 + $0x10] sm:$0xf]
    %v1260 = vld [vmem:[%s16 + $0x14] sm:$0xf]
    %v1261 = vld [vmem:[%s16 + $0x18] sm:$0xf]
    %v1262 = vld [vmem:[%s16 + $0x1c] sm:$0xf]
    %v1263 = vld [vmem:[%s16 + $0x20] sm:$0xf]
    %v1264 = vld [vmem:[%s16 + $0x24] sm:$0xf]
    %v1265 = vld [vmem:[%s16 + $0x28] sm:$0xf]
    %v1266 = vld [vmem:[%s16 + $0x2c] sm:$0xf]
    %v1267 = vld [vmem:[%s16 + $0x30] sm:$0xf]
    %v1268 = vld [vmem:[%s16 + $0x34] sm:$0xf]
    %v1269 = vld [vmem:[%s16 + $0x38] sm:$0xf]
    %v1270 = vld [vmem:[%s16 + $0x3c] sm:$0xf]
    %v1271 = vld [vmem:[%s17] sm:$0x1]
    %v1273 = vperm.slane %v1271, 0
    %v1291 = vunpack.c.l.b16 %v1255
    %v1292 = vunpack.c.l.b16 %v1256
    %v1293 = vunpack.c.l.b16 %v1257
    %v1294 = vunpack.c.l.b16 %v1258
    %v1295 = vunpack.c.l.b16 %v1259
    %v1296 = vunpack.c.l.b16 %v1260
    %v1297 = vunpack.c.l.b16 %v1261
    %v1298 = vunpack.c.l.b16 %v1262
    %v1299 = vunpack.c.l.b16 %v1263
    %v1300 = vunpack.c.l.b16 %v1264
    %v1301 = vunpack.c.l.b16 %v1265
    %v1302 = vunpack.c.l.b16 %v1266
    %v1303 = vunpack.c.l.b16 %v1267
    %v1304 = vunpack.c.l.b16 %v1268
    %v1305 = vunpack.c.l.b16 %v1269
    %v1306 = vunpack.c.l.b16 %v1270
    %v1307 = vpack.c.b16 %v1292, %v1291
    %v1308 = vpack.c.b16 %v1294, %v1293
    %v1309 = vpack.c.b16 %v1296, %v1295
    %v1310 = vpack.c.b16 %v1298, %v1297
    %v1311 = vpack.c.b16 %v1300, %v1299
    %v1312 = vpack.c.b16 %v1302, %v1301
    %v1313 = vpack.c.b16 %v1304, %v1303
    %v1314 = vpack.c.b16 %v1306, %v1305
    %1323 = vmatpush.bf16.msra.mxu0 %v1314
    %1324 = vmatpush.bf16.msra.mxu0 %v1313
    %1325 = vmatpush.bf16.msra.mxu0 %v1312
    %1326 = vmatpush.bf16.msra.mxu0 %v1311
    %1327 = vmatpush.bf16.msra.mxu0 %v1310
    %1328 = vmatpush.bf16.msra.mxu0 %v1309
    %1329 = vmatpush.bf16.msra.mxu0 %v1308
    %1330 = vmatpush.bf16.msra.mxu0 %v1307
    %1331 = vmatmul.bf16.gmra.mxu0 %v1254
    %v1332 = vpop.f32.mrf.mxu0
    %v1333 = vadd.f32 %v1273, %v1332
    %v1334 = vpop.f32.mrf.mxu0
    %1335 = vdwg.mxu0
    %1336 = vst [vmem:[%s18] sm:$0xff] %v1333
    // Predicated region
    $region74: #{funsd_forward.1} parent=1 // pred_check
      _
    $region75: #{funsd_forward.1} parent=1 // pred_check_branch
      %1338 = sbr.rel (0) target = $region77
    $region76: #{funsd_forward.1} parent=1 // pred_region
      _
    $region77: #{funsd_forward.1} parent=1 // pred_fallthru
      _
    // Predicated region
    $region78: #{funsd_forward.1} parent=1 // pred_check
      _
    $region79: #{funsd_forward.1} parent=1 // pred_check_branch
      %1340 = sbr.rel (0) target = $region81
    $region80: #{funsd_forward.1} parent=1 // pred_region
      %1342 = vsyncadd [#allocation3], 0
      %s1344 = sshll.u32 [#allocation2], 4
      %s1345 = int_to_ptr.vmem [resolvable:$true] %s1344
      %s1346 = sshll.u32 %s19, 4
      %s1347 = int_to_ptr.hbm [resolvable:$true] %s1346
      %1349 = dma.vmem_to_hbm [thread:$0]  %s1345, 128, %s1347, [#allocation3]
    $region81: #{funsd_forward.1} parent=1 // pred_fallthru
      _
    // Predicated region
    $region82: #{funsd_forward.1} parent=1 // pred_check
      _
    $region83: #{funsd_forward.1} parent=1 // pred_check_branch
      %1351 = sbr.rel (0) target = $region85
    $region84: #{funsd_forward.1} parent=1 // pred_region
      _
    $region85: #{funsd_forward.1} parent=1 // pred_fallthru
      _
    // Predicated region
    $region86: #{funsd_forward.1} parent=1 // pred_check
      _
    $region87: #{funsd_forward.1} parent=1 // pred_check_branch
      %1353 = sbr.rel (0) target = $region89
    $region88: #{funsd_forward.1} parent=1 // pred_region
      %1355 = dma.done [#allocation3], 128
    $region89: #{funsd_forward.1} parent=1 // pred_fallthru
      _
    %1356 = vsyncpa [#allocation3], 1

</llo_original>
